<compile_context>
chip_gen: v7x
topology: tpu7x:2x2x1
jax: 0.10.0
libtpu: 0.0.40
codegen_flags: <defaults>
</compile_context>

<pallas_src>
import functools

import jax
import jax.numpy as jnp
from jax.experimental import pallas as pl
from jax.experimental.pallas import tpu as pltpu


def _convbn_kernel(x_ref, w_ref, shift_ref, o_ref, *, K: int, tL: int,
                   nonlinear: str):
    # x_ref:     (tL + H, C_in_p)       bf16 halo tile (batch/tile dims squeezed)
    # w_ref:     (K*C_in_p, C_out_p)    bf16, BN scale folded in
    # shift_ref: (1, C_out_p)           f32, conv bias + BN shift folded
    # o_ref:     (tL, C_out_p)          output tile for this (batch, L-tile)
    #
    # Conv1d as ONE fused contraction over (K, C_in): concatenate the K shifted
    # windows along the lane axis and do a single MXU matmul (f32 accumulate
    # stays inside the MXU accumulation path — no VMEM accumulator traffic).
    taps = jnp.concatenate(
        [x_ref[pl.ds(k, tL), :] for k in range(K)], axis=-1)   # (tL, K*C_in_p)
    y = jnp.dot(taps, w_ref[...], preferred_element_type=jnp.float32)
    y = y + shift_ref[0]                   # folded conv-bias + BatchNorm (f32)
    if nonlinear == "relu":
        y = jnp.maximum(y, 0.0)
    elif nonlinear == "tanh":
        y = jnp.tanh(y)
    # Dropout: identity in eval mode.
    o_ref[...] = y.astype(o_ref.dtype)


def _round_up(a: int, m: int) -> int:
    return (a + m - 1) // m * m


def _vmem_limit_bytes() -> int:
    """~3/4 of physical VMEM, capped at 100 MiB (≈96 MiB v5e/v6e, ≈48 MiB v7x)."""
    try:
        cap = int(pltpu.get_tpu_info().vmem_capacity_bytes)
    except Exception:
        cap = 128 * 1024 * 1024
    return int(min(cap * 3 // 4, 100 * 1024 * 1024))


def conv_bn_block(x, w, b, gamma, beta, running_mean, running_var,
                  *, nonlinear=None, eps=1e-5, tile_l=None, out_dtype=None):
    """Forward pass of ConvBNBlock (eval mode).

    x: [N, C_in, L] (PyTorch NCL).  Returns [N, C_out, L].
    w: [C_out, C_in, K] (PyTorch Conv1d weight), b: [C_out].
    out_dtype: output dtype (default x.dtype); pass bf16 when the consumer is
               bf16 anyway to halve the HBM writeback.
    """
    N, C_in, L = x.shape
    C_out, _, K = w.shape
    assert (K - 1) % 2 == 0, "ConvBNBlock requires odd kernel_size"
    P = (K - 1) // 2
    out_dtype = x.dtype if out_dtype is None else out_dtype
    nl = nonlinear if nonlinear in ("relu", "tanh") else "none"

    # ---- parameter folding (plain JAX, O(K*C_in*C_out) once) ----
    scale = gamma / jnp.sqrt(running_var + eps)                  # [C_out]
    shift = beta + (b - running_mean) * scale                    # [C_out]
    w_kio = jnp.transpose(w, (2, 1, 0)) * scale[None, None, :]   # [K,C_in,C_out]

    # ---- tiling / lane padding ----
    C_in_p = _round_up(C_in, 128)
    C_out_p = _round_up(C_out, 128)
    H = max(8, _round_up(K - 1, 8))            # halo rows (multiple of 8)
    if tile_l is None:
        tile_l = 512 if L >= 512 else 256      # amortize per-step overhead
    tL = max(H, min(tile_l, _round_up(L, 8)))  # L tile (multiple of 8, >= halo)
    L_p = _round_up(L, tL)                     # padded output length
    num_tiles = L_p // tL

    # ---- layout: NCL -> NLC, zero-pad (conv halo + tile round-up + lanes),
    #      bf16 cast, and pre-tiled overlapping halo windows so the kernel's
    #      x block is O(tL) instead of O(L). ----
    x_nlc = jnp.transpose(x, (0, 2, 1))                          # [N, L, C_in]
    x_pad = jnp.pad(
        x_nlc, ((0, 0), (P, L_p + H - L - P), (0, C_in_p - C_in))
    ).astype(jnp.bfloat16)                                       # [N, L_p+H, C_in_p]
    main = x_pad[:, :L_p, :].reshape(N, num_tiles, tL, C_in_p)
    halo = jnp.pad(x_pad[:, tL:, :], ((0, 0), (0, tL - H), (0, 0)))
    halo = halo.reshape(N, num_tiles, tL, C_in_p)[:, :, :H, :]
    x_tiled = jnp.concatenate([main, halo], axis=2)              # [N,nt,tL+H,C_in_p]

    # Folded weight, flattened so the kernel does ONE (tL, K*C_in) contraction.
    w_pad = jnp.pad(w_kio, ((0, 0), (0, C_in_p - C_in), (0, C_out_p - C_out)))
    w_flat = w_pad.reshape(K * C_in_p, C_out_p).astype(jnp.bfloat16)
    shift_pad = jnp.pad(shift, (0, C_out_p - C_out)).reshape(1, C_out_p)
    shift_pad = shift_pad.astype(jnp.float32)

    grid = (N, num_tiles)
    kernel = functools.partial(_convbn_kernel, K=K, tL=tL, nonlinear=nl)

    out_itemsize = jnp.dtype(out_dtype).itemsize
    cost = pl.CostEstimate(
        flops=2 * N * L * C_in * C_out * K,
        transcendentals=(N * L * C_out if nl == "tanh" else 0),
        bytes_accessed=(x_tiled.size * 2 + w_flat.size * 2 + C_out_p * 4
                        + N * L_p * C_out_p * out_itemsize),
    )

    def _run(single_buffer_consts: bool):
        const_kw = ({"pipeline_mode": pl.Buffered(1)}
                    if single_buffer_consts else {})
        in_specs = [
            # Halo tile of x: O(tL) VMEM, pipelined along the L-tile axis.
            pl.BlockSpec((pl.Squeezed(), pl.Squeezed(), tL + H, C_in_p),
                         lambda n, l: (n, l, 0, 0)),
            # Folded weight: constant across the grid -> single-buffered.
            pl.BlockSpec((K * C_in_p, C_out_p), lambda n, l: (0, 0), **const_kw),
            # Folded bias/shift: constant across the grid -> single-buffered.
            pl.BlockSpec((1, C_out_p), lambda n, l: (0, 0), **const_kw),
        ]
        return pl.pallas_call(
            kernel,
            out_shape=jax.ShapeDtypeStruct((N, L_p, C_out_p), out_dtype),
            grid_spec=pltpu.PrefetchScalarGridSpec(
                num_scalar_prefetch=0,
                grid=grid,
                in_specs=in_specs,
                out_specs=pl.BlockSpec((pl.Squeezed(), tL, C_out_p),
                                       lambda n, l: (n, l, 0)),
            ),
            compiler_params=pltpu.CompilerParams(
                dimension_semantics=("parallel", "parallel"),
                vmem_limit_bytes=_vmem_limit_bytes(),
            ),
            cost_estimate=cost,
        )(x_tiled, w_flat, shift_pad)

    try:
        out_nlc = _run(True)
    except Exception:
        # Fallback if this runtime rejects pipeline_mode=pl.Buffered(1).
        out_nlc = _run(False)

    out = out_nlc[:, :L, :C_out]                                 # strip padding
    return jnp.transpose(out, (0, 2, 1))                         # [N, C_out, L]


def _reference(x, w, b, gamma, beta, running_mean, running_var,
               *, nonlinear=None, eps=1e-5):
    """Pure-JAX f32 reference (lax.conv) for correctness check."""
    P = (w.shape[2] - 1) // 2
    y = jax.lax.conv_general_dilated(
        x, w, window_strides=(1,), padding=[(P, P)],
        dimension_numbers=("NCH", "OIH", "NCH"))
    y = y + b[None, :, None]
    scale = gamma / jnp.sqrt(running_var + eps)
    shift = beta - running_mean * scale
    y = y * scale[None, :, None] + shift[None, :, None]
    if nonlinear == "relu":
        y = jnp.maximum(y, 0.0)
    elif nonlinear == "tanh":
        y = jnp.tanh(y)
    return y


if __name__ == "__main__":
    # Small shapes consistent with ConvBNBlock's Conv1d forward: [N, C_in, L].
    N, C_in, C_out, L, K = 2, 4, 8, 16, 5

    key = jax.random.PRNGKey(0)
    kx, kw, kb, kg, kbt = jax.random.split(key, 5)

    x = jax.random.normal(kx, (N, C_in, L), dtype=jnp.float32)

    # Deterministic "PyTorch-like" init: U(-1/sqrt(fan_in), 1/sqrt(fan_in)).
    fan_in = C_in * K
    bound = 1.0 / jnp.sqrt(jnp.float32(fan_in))
    w = jax.random.uniform(kw, (C_out, C_in, K), jnp.float32, -bound, bound)
    b = jax.random.uniform(kb, (C_out,), jnp.float32, -bound, bound)

    gamma = 1.0 + 0.1 * jax.random.normal(kg, (C_out,), jnp.float32)
    beta = 0.1 * jax.random.normal(kbt, (C_out,), jnp.float32)
    running_mean = jnp.zeros((C_out,), jnp.float32)
    running_var = jnp.ones((C_out,), jnp.float32)

    for nl in ("relu", "tanh", None):
        out = conv_bn_block(x, w, b, gamma, beta, running_mean, running_var,
                            nonlinear=nl)
        out = jax.block_until_ready(out)
        ref = _reference(x, w, b, gamma, beta, running_mean, running_var,
                         nonlinear=nl)
        assert out.shape == (N, C_out, L)
        # bf16 MXU operands -> loosened tolerance vs the f32 reference.
        assert jnp.allclose(out, ref, atol=2e-2, rtol=2e-2), nl

    # bf16 output path (for bf16 consumers): shape/dtype + loose value check.
    out_bf16 = conv_bn_block(x, w, b, gamma, beta, running_mean, running_var,
                             nonlinear="relu", out_dtype=jnp.bfloat16)
    out_bf16 = jax.block_until_ready(out_bf16)
    ref_relu = _reference(x, w, b, gamma, beta, running_mean, running_var,
                          nonlinear="relu")
    assert out_bf16.dtype == jnp.bfloat16 and out_bf16.shape == (N, C_out, L)
    assert jnp.allclose(out_bf16.astype(jnp.float32), ref_relu,
                        atol=5e-2, rtol=5e-2)

    print("KERNEL_OK")
</pallas_src>

<mosaic_0001>
module attributes {stable_mosaic.version = 11 : i64} {
  func.func @_convbn_kernel(%arg0: i32, %arg1: i32, %arg2: memref<1x1x24x128xbf16, #tpu.memory_space<vmem>>, %arg3: memref<640x128xbf16, #tpu.memory_space<vmem>>, %arg4: memref<1x128xf32, #tpu.memory_space<vmem>>, %arg5: memref<1x16x128xf32, #tpu.memory_space<vmem>>) attributes {dimension_semantics = [#tpu.dimension_semantics<parallel>, #tpu.dimension_semantics<parallel>], iteration_bounds = array<i64: 2, 1>, scalar_prefetch = 0 : i64, scratch_operands = 0 : i64, tpu.core_type = #tpu.core_type<tc>, window_params = [{transform_indices = @transform_0, window_bounds = array<i64: 1, 1, 24, 128>}, {pipeline_mode = #tpu.pipeline_mode<synchronous>, transform_indices = @transform_1, window_bounds = array<i64: 640, 128>}, {pipeline_mode = #tpu.pipeline_mode<synchronous>, transform_indices = @transform_2, window_bounds = array<i64: 1, 128>}, {transform_indices = @transform_3, window_bounds = array<i64: 1, 16, 128>}]} {
    %c0 = arith.constant 0 : index
    %c0_0 = arith.constant 0 : index
    %c0_1 = arith.constant 0 : index
    %c0_2 = arith.constant 0 : index
    %0 = vector.load %arg2[%c0, %c0_0, %c0_1, %c0_2] : memref<1x1x24x128xbf16, #tpu.memory_space<vmem>>, vector<1x1x16x128xbf16>
    %1 = vector.shape_cast %0 : vector<1x1x16x128xbf16> to vector<16x128xbf16>
    %c0_3 = arith.constant 0 : index
    %c0_4 = arith.constant 0 : index
    %c1 = arith.constant 1 : index
    %c0_5 = arith.constant 0 : index
    %2 = vector.load %arg2[%c0_3, %c0_4, %c1, %c0_5] : memref<1x1x24x128xbf16, #tpu.memory_space<vmem>>, vector<1x1x16x128xbf16>
    %3 = vector.shape_cast %2 : vector<1x1x16x128xbf16> to vector<16x128xbf16>
    %c0_6 = arith.constant 0 : index
    %c0_7 = arith.constant 0 : index
    %c2 = arith.constant 2 : index
    %c0_8 = arith.constant 0 : index
    %4 = vector.load %arg2[%c0_6, %c0_7, %c2, %c0_8] : memref<1x1x24x128xbf16, #tpu.memory_space<vmem>>, vector<1x1x16x128xbf16>
    %5 = vector.shape_cast %4 : vector<1x1x16x128xbf16> to vector<16x128xbf16>
    %c0_9 = arith.constant 0 : index
    %c0_10 = arith.constant 0 : index
    %c3 = arith.constant 3 : index
    %c0_11 = arith.constant 0 : index
    %6 = vector.load %arg2[%c0_9, %c0_10, %c3, %c0_11] : memref<1x1x24x128xbf16, #tpu.memory_space<vmem>>, vector<1x1x16x128xbf16>
    %7 = vector.shape_cast %6 : vector<1x1x16x128xbf16> to vector<16x128xbf16>
    %c0_12 = arith.constant 0 : index
    %c0_13 = arith.constant 0 : index
    %c4 = arith.constant 4 : index
    %c0_14 = arith.constant 0 : index
    %8 = vector.load %arg2[%c0_12, %c0_13, %c4, %c0_14] : memref<1x1x24x128xbf16, #tpu.memory_space<vmem>>, vector<1x1x16x128xbf16>
    %9 = vector.shape_cast %8 : vector<1x1x16x128xbf16> to vector<16x128xbf16>
    %10 = tpu.concatenate %1, %3, %5, %7, %9 in 1 : vector<16x128xbf16>, vector<16x128xbf16>, vector<16x128xbf16>, vector<16x128xbf16>, vector<16x128xbf16> -> vector<16x640xbf16>
    %c0_15 = arith.constant 0 : index
    %c0_16 = arith.constant 0 : index
    %11 = vector.load %arg3[%c0_15, %c0_16] : memref<640x128xbf16, #tpu.memory_space<vmem>>, vector<640x128xbf16>
    %cst = arith.constant dense<0.000000e+00> : vector<16x128xf32>
    %12 = tpu.matmul %10, %11, %cst {dimension_numbers = #tpu.dot_dimension_numbers<[1], [0], [0], [1], [0, 0, 1, 1], [], []>} : vector<16x640xbf16>, vector<640x128xbf16>, vector<16x128xf32> -> vector<16x128xf32>
    %c0_17 = arith.constant 0 : index
    %c0_18 = arith.constant 0 : index
    %13 = vector.load %arg4[%c0_17, %c0_18] : memref<1x128xf32, #tpu.memory_space<vmem>>, vector<1x128xf32>
    %14 = vector.shape_cast %13 : vector<1x128xf32> to vector<128xf32>
    %15 = vector.shape_cast %14 : vector<128xf32> to vector<1x128xf32>
    %16 = vector.broadcast %15 : vector<1x128xf32> to vector<16x128xf32>
    %17 = arith.addf %12, %16 : vector<16x128xf32>
    %cst_19 = arith.constant 0.000000e+00 : f32
    %18 = vector.broadcast %cst_19 : f32 to vector<16x128xf32>
    %19 = arith.maximumf %17, %18 : vector<16x128xf32>
    %c0_20 = arith.constant 0 : index
    %c0_21 = arith.constant 0 : index
    %c0_22 = arith.constant 0 : index
    %20 = vector.load %arg5[%c0_20, %c0_21, %c0_22] : memref<1x16x128xf32, #tpu.memory_space<vmem>>, vector<1x16x128xf32>
    %21 = vector.shape_cast %20 : vector<1x16x128xf32> to vector<16x128xf32>
    %22 = vector.shape_cast %19 : vector<16x128xf32> to vector<1x16x128xf32>
    tpu.vector_store %arg5[%c0_20, %c0_21, %c0_22], %22 {strides = array<i32>} : memref<1x16x128xf32, #tpu.memory_space<vmem>>, vector<1x16x128xf32>,
    return
  }
  func.func @transform_0(%arg0: i32, %arg1: i32) -> (i32, i32, i32, i32) {
    %c0_i32 = arith.constant 0 : i32
    %c0_i32_0 = arith.constant 0 : i32
    %c0_i32_1 = arith.constant 0 : i32
    return %arg0, %arg1, %c0_i32, %c0_i32_0 : i32, i32, i32, i32
  }
  func.func @transform_1(%arg0: i32, %arg1: i32) -> (i32, i32) {
    %c0_i32 = arith.constant 0 : i32
    %c0_i32_0 = arith.constant 0 : i32
    %c0_i32_1 = arith.constant 0 : i32
    return %c0_i32, %c0_i32_0 : i32, i32
  }
  func.func @transform_2(%arg0: i32, %arg1: i32) -> (i32, i32) {
    %c0_i32 = arith.constant 0 : i32
    %c0_i32_0 = arith.constant 0 : i32
    %c0_i32_1 = arith.constant 0 : i32
    return %c0_i32, %c0_i32_0 : i32, i32
  }
  func.func @transform_3(%arg0: i32, %arg1: i32) -> (i32, i32, i32) {
    %c0_i32 = arith.constant 0 : i32
    %c0_i32_0 = arith.constant 0 : i32
    return %arg0, %arg1, %c0_i32 : i32, i32, i32
  }
}

module attributes {stable_mosaic.version = 11 : i64} {
  func.func @_convbn_kernel(%arg0: i32, %arg1: i32, %arg2: memref<1x1x24x128xbf16, #tpu.memory_space<vmem>>, %arg3: memref<640x128xbf16, #tpu.memory_space<vmem>>, %arg4: memref<1x128xf32, #tpu.memory_space<vmem>>, %arg5: memref<1x16x128xf32, #tpu.memory_space<vmem>>) attributes {dimension_semantics = [#tpu.dimension_semantics<parallel>, #tpu.dimension_semantics<parallel>], iteration_bounds = array<i64: 2, 1>, scalar_prefetch = 0 : i64, scratch_operands = 0 : i64, tpu.core_type = #tpu.core_type<tc>, window_params = [{transform_indices = @transform_0, window_bounds = array<i64: 1, 1, 24, 128>}, {pipeline_mode = #tpu.pipeline_mode<synchronous>, transform_indices = @transform_1, window_bounds = array<i64: 640, 128>}, {pipeline_mode = #tpu.pipeline_mode<synchronous>, transform_indices = @transform_2, window_bounds = array<i64: 1, 128>}, {transform_indices = @transform_3, window_bounds = array<i64: 1, 16, 128>}]} {
    %c0 = arith.constant 0 : index
    %c0_0 = arith.constant 0 : index
    %c0_1 = arith.constant 0 : index
    %c0_2 = arith.constant 0 : index
    %0 = vector.load %arg2[%c0, %c0_0, %c0_1, %c0_2] : memref<1x1x24x128xbf16, #tpu.memory_space<vmem>>, vector<1x1x16x128xbf16>
    %1 = vector.shape_cast %0 : vector<1x1x16x128xbf16> to vector<16x128xbf16>
    %c0_3 = arith.constant 0 : index
    %c0_4 = arith.constant 0 : index
    %c1 = arith.constant 1 : index
    %c0_5 = arith.constant 0 : index
    %2 = vector.load %arg2[%c0_3, %c0_4, %c1, %c0_5] : memref<1x1x24x128xbf16, #tpu.memory_space<vmem>>, vector<1x1x16x128xbf16>
    %3 = vector.shape_cast %2 : vector<1x1x16x128xbf16> to vector<16x128xbf16>
    %c0_6 = arith.constant 0 : index
    %c0_7 = arith.constant 0 : index
    %c2 = arith.constant 2 : index
    %c0_8 = arith.constant 0 : index
    %4 = vector.load %arg2[%c0_6, %c0_7, %c2, %c0_8] : memref<1x1x24x128xbf16, #tpu.memory_space<vmem>>, vector<1x1x16x128xbf16>
    %5 = vector.shape_cast %4 : vector<1x1x16x128xbf16> to vector<16x128xbf16>
    %c0_9 = arith.constant 0 : index
    %c0_10 = arith.constant 0 : index
    %c3 = arith.constant 3 : index
    %c0_11 = arith.constant 0 : index
    %6 = vector.load %arg2[%c0_9, %c0_10, %c3, %c0_11] : memref<1x1x24x128xbf16, #tpu.memory_space<vmem>>, vector<1x1x16x128xbf16>
    %7 = vector.shape_cast %6 : vector<1x1x16x128xbf16> to vector<16x128xbf16>
    %c0_12 = arith.constant 0 : index
    %c0_13 = arith.constant 0 : index
    %c4 = arith.constant 4 : index
    %c0_14 = arith.constant 0 : index
    %8 = vector.load %arg2[%c0_12, %c0_13, %c4, %c0_14] : memref<1x1x24x128xbf16, #tpu.memory_space<vmem>>, vector<1x1x16x128xbf16>
    %9 = vector.shape_cast %8 : vector<1x1x16x128xbf16> to vector<16x128xbf16>
    %10 = tpu.concatenate %1, %3, %5, %7, %9 in 1 : vector<16x128xbf16>, vector<16x128xbf16>, vector<16x128xbf16>, vector<16x128xbf16>, vector<16x128xbf16> -> vector<16x640xbf16>
    %c0_15 = arith.constant 0 : index
    %c0_16 = arith.constant 0 : index
    %11 = vector.load %arg3[%c0_15, %c0_16] : memref<640x128xbf16, #tpu.memory_space<vmem>>, vector<640x128xbf16>
    %cst = arith.constant dense<0.000000e+00> : vector<16x128xf32>
    %12 = tpu.matmul %10, %11, %cst {dimension_numbers = #tpu.dot_dimension_numbers<[1], [0], [0], [1], [0, 0, 1, 1], [], []>} : vector<16x640xbf16>, vector<640x128xbf16>, vector<16x128xf32> -> vector<16x128xf32>
    %c0_17 = arith.constant 0 : index
    %c0_18 = arith.constant 0 : index
    %13 = vector.load %arg4[%c0_17, %c0_18] : memref<1x128xf32, #tpu.memory_space<vmem>>, vector<1x128xf32>
    %14 = vector.shape_cast %13 : vector<1x128xf32> to vector<128xf32>
    %15 = vector.shape_cast %14 : vector<128xf32> to vector<1x128xf32>
    %16 = vector.broadcast %15 : vector<1x128xf32> to vector<16x128xf32>
    %17 = arith.addf %12, %16 : vector<16x128xf32>
    %cst_19 = arith.constant 0.000000e+00 : f32
    %18 = vector.broadcast %cst_19 : f32 to vector<16x128xf32>
    %19 = arith.maximumf %17, %18 : vector<16x128xf32>
    %c0_20 = arith.constant 0 : index
    %c0_21 = arith.constant 0 : index
    %c0_22 = arith.constant 0 : index
    %20 = vector.load %arg5[%c0_20, %c0_21, %c0_22] : memref<1x16x128xf32, #tpu.memory_space<vmem>>, vector<1x16x128xf32>
    %21 = vector.shape_cast %20 : vector<1x16x128xf32> to vector<16x128xf32>
    %22 = vector.shape_cast %19 : vector<16x128xf32> to vector<1x16x128xf32>
    tpu.vector_store %arg5[%c0_20, %c0_21, %c0_22], %22 {strides = array<i32>} : memref<1x16x128xf32, #tpu.memory_space<vmem>>, vector<1x16x128xf32>,
    return
  }
  func.func @transform_0(%arg0: i32, %arg1: i32) -> (i32, i32, i32, i32) {
    %c0_i32 = arith.constant 0 : i32
    %c0_i32_0 = arith.constant 0 : i32
    %c0_i32_1 = arith.constant 0 : i32
    return %arg0, %arg1, %c0_i32, %c0_i32_0 : i32, i32, i32, i32
  }
  func.func @transform_1(%arg0: i32, %arg1: i32) -> (i32, i32) {
    %c0_i32 = arith.constant 0 : i32
    %c0_i32_0 = arith.constant 0 : i32
    %c0_i32_1 = arith.constant 0 : i32
    return %c0_i32, %c0_i32_0 : i32, i32
  }
  func.func @transform_2(%arg0: i32, %arg1: i32) -> (i32, i32) {
    %c0_i32 = arith.constant 0 : i32
    %c0_i32_0 = arith.constant 0 : i32
    %c0_i32_1 = arith.constant 0 : i32
    return %c0_i32, %c0_i32_0 : i32, i32
  }
  func.func @transform_3(%arg0: i32, %arg1: i32) -> (i32, i32, i32) {
    %c0_i32 = arith.constant 0 : i32
    %c0_i32_0 = arith.constant 0 : i32
    return %arg0, %arg1, %c0_i32 : i32, i32, i32
  }
}

</mosaic_0001>

<llo_original>
// kernel: tpu_custom_call.1
$region0: #{tpu_custom_call.1}
  #allocation0 [shape = 'u32[]', space=smem, size = 0x4, offset = 0x4, fixed_abs, tag = 'smem constant byte address 0x4 - core index']
  #allocation1 [shape = 'u32[144,128]{1,0:T(1,128)}', space=vmem, size = 0x12000, scoped, tag = 'internal scratch']
  %s0 = inlined_call_operand.hbm [shape: bf16[2,1,24,128], index: 0, kind: input, shape index: {}]
  %s1 = inlined_call_operand.hbm [shape: bf16[640,128], index: 1, kind: input, shape index: {}]
  %s2 = inlined_call_operand.hbm [shape: f32[1,128], index: 2, kind: input, shape index: {}]
  %s3 = inlined_call_operand.hbm [shape: f32[2,16,128], index: 3, kind: output, shape index: {}]
  %s4 = sld [smem:[#allocation0]]
  $region57: #{tpu_custom_call.1} parent=0
    _
  %s6 = ssub.s32 1, %s4
  %s7 = scalar_select 0, %s6, %s4
  $region1: #{tpu_custom_call.1} parent=0
    #allocation2 [shape = 'u8[12288]{0}', space=vmem, size = 0x3000, scoped, tag = 'input window, operand 0']
    #allocation3 [shape = 's32[2]{0}', space=sflag, size = 0x8, scoped, tag = 'scoped memory for tpu_custom_call.1']
    #allocation4 [shape = 's32[2]{0}', space=sflag, size = 0x8, scoped, tag = 'scoped memory for tpu_custom_call.1']
    #allocation5 [shape = 'u8[163840]{0}', space=vmem, size = 0x28000, scoped, tag = 'input window, operand 1, single buffered']
    #allocation6 [shape = 's32[1]{0}', space=sflag, size = 0x4, scoped, tag = 'scoped memory for tpu_custom_call.1']
    #allocation7 [shape = 'u8[512]{0}', space=vmem, size = 0x400, scoped, tag = 'input window, operand 2, single buffered']
    #allocation8 [shape = 'u8[16384]{0}', space=vmem, size = 0x4000, scoped, tag = 'output window, operand 0']
    %8 = vsyncpa [#allocation3], 0
    %s9 = scalar_lea.sflag [#allocation3], 1
    %10 = vsyncpa %s9, 0
    %11 = vsyncpa [#allocation6], 0
    %12 = vsyncpa [#allocation4], 0
    %s13 = scalar_lea.sflag [#allocation4], 1
    %14 = vsyncpa %s13, 0
    loop: start=0, step=1, limit=4
    $region2: #{tpu_custom_call.1} parent=1 // loop_pre_header
      _
    $region3: #{tpu_custom_call.1} parent=1 // loop_header
      %s16 = sphi 0, %s20
      %p17 = scmp.ge.s32.totalorder %s16, 4
      %s23 = sphi 0, %s35
      %s24 = sphi 0, %s31
      %s25 = sphi 0, %s23
      %s26 = sphi 0, %s24
      %s27 = sphi 0, %s25
      %s28 = sphi 0, %s26
      %s40 = sphi 0, %s42
      %s43 = sphi 0, %s40
      %s44 = sphi 0, %s43
      %s60 = sphi 0, %s44
      %s64 = sphi 0, %s64
      %s66 = sphi 0, %s64
      %s67 = sphi 0, %s66
      %s81 = sphi 0, %s67
      %s85 = sphi 0, %s85
      %s87 = sphi 0, %s85
      %s88 = sphi 0, %s87
      %s102 = sphi 0, %s88
      %s110 = sphi 0, %s112
      %s113 = sphi 0, %s110
      %s114 = sphi 0, %s113
      %s130 = sphi 0, %s114
    $region4: #{tpu_custom_call.1} parent=1 // loop_header_branch
      %19 = sbr.rel (%p17) target = $region8
    $region5: #{tpu_custom_call.1} parent=1 // loop_body
      %s21 = ssub.s32 %s16, 1
      %s22 = ssub.s32 %s16, 2
      %s29 = sadd.s32 1, %s24
      %p30 = scmp.ge.s32.totalorder %s29, 1
      %s31 = scalar_select %p30, 0, %s29
      %s32 = sadd.s32 1, %s23
      %s33 = scalar_select %p30, %s32, %s23
      %p34 = scmp.ge.s32.totalorder %s33, 2
      %s35 = scalar_select %p34, 0, %s33
      %s36 = ssub.s32 %s23, %s35
      %s37 = ssub.s32 %s24, %s31
      %s38 = sor.u32 %s36, %s37
      %p39 = scmp.eq.s32.totalorder %s38, 0
      %s41 = sadd.s32 %s40, 1
      %s42 = scalar_select %p39, %s40, %s41
      %p45 = pneg %p39
      %p46 = scmp.eq.s32.totalorder %s16, 1
      %p47 = por %p45, %p46
      %p48 = scmp.ne.s32.totalorder %s40, %s43
      %p49 = scmp.eq.s32.totalorder %s16, 0
      %p50 = por %p48, %p49
      %p51 = scmp.ne.s32.totalorder %s40, %s43
      %p52 = scmp.eq.s32.totalorder %s21, 1
      %p53 = por %p51, %p52
      %p54 = scmp.ne.s32.totalorder %s43, %s44
      %p55 = scmp.eq.s32.totalorder %s21, 0
      %p56 = por %p54, %p55
      %p57 = scmp.ne.s32.totalorder %s43, %s44
      %p58 = scmp.eq.s32.totalorder %s22, 1
      %p59 = por %p57, %p58
      %p61 = scmp.ne.s32.totalorder %s44, %s60
      %p62 = scmp.eq.s32.totalorder %s22, 0
      %p63 = por %p61, %p62
      %s65 = sadd.s32 %s64, 1
      %p68 = scmp.eq.s32.totalorder %s16, 1
      %p69 = scmp.ne.s32.totalorder %s64, %s66
      %p70 = scmp.eq.s32.totalorder %s16, 0
      %p71 = por %p69, %p70
      %p72 = scmp.ne.s32.totalorder %s64, %s66
      %p73 = scmp.eq.s32.totalorder %s21, 1
      %p74 = por %p72, %p73
      %p75 = scmp.ne.s32.totalorder %s66, %s67
      %p76 = scmp.eq.s32.totalorder %s21, 0
      %p77 = por %p75, %p76
      %p78 = scmp.ne.s32.totalorder %s66, %s67
      %p79 = scmp.eq.s32.totalorder %s22, 1
      %p80 = por %p78, %p79
      %p82 = scmp.ne.s32.totalorder %s67, %s81
      %p83 = scmp.eq.s32.totalorder %s22, 0
      %p84 = por %p82, %p83
      %s86 = sadd.s32 %s85, 1
      %p89 = scmp.eq.s32.totalorder %s16, 1
      %p90 = scmp.ne.s32.totalorder %s85, %s87
      %p91 = scmp.eq.s32.totalorder %s16, 0
      %p92 = por %p90, %p91
      %p93 = scmp.ne.s32.totalorder %s85, %s87
      %p94 = scmp.eq.s32.totalorder %s21, 1
      %p95 = por %p93, %p94
      %p96 = scmp.ne.s32.totalorder %s87, %s88
      %p97 = scmp.eq.s32.totalorder %s21, 0
      %p98 = por %p96, %p97
      %p99 = scmp.ne.s32.totalorder %s87, %s88
      %p100 = scmp.eq.s32.totalorder %s22, 1
      %p101 = por %p99, %p100
      %p103 = scmp.ne.s32.totalorder %s88, %s102
      %p104 = scmp.eq.s32.totalorder %s22, 0
      %p105 = por %p103, %p104
      %s106 = ssub.s32 %s23, %s35
      %s107 = ssub.s32 %s24, %s31
      %s108 = sor.u32 %s106, %s107
      %p109 = scmp.eq.s32.totalorder %s108, 0
      %s111 = sadd.s32 %s110, 1
      %s112 = scalar_select %p109, %s110, %s111
      %p115 = pneg %p109
      %p116 = scmp.eq.s32.totalorder %s16, 1
      %p117 = por %p115, %p116
      %p118 = scmp.ne.s32.totalorder %s110, %s113
      %p119 = scmp.eq.s32.totalorder %s16, 0
      %p120 = por %p118, %p119
      %p121 = scmp.ne.s32.totalorder %s110, %s113
      %p122 = scmp.eq.s32.totalorder %s21, 1
      %p123 = por %p121, %p122
      %p124 = scmp.ne.s32.totalorder %s113, %s114
      %p125 = scmp.eq.s32.totalorder %s21, 0
      %p126 = por %p124, %p125
      %p127 = scmp.ne.s32.totalorder %s113, %s114
      %p128 = scmp.eq.s32.totalorder %s22, 1
      %p129 = por %p127, %p128
      %p131 = scmp.ne.s32.totalorder %s114, %s130
      %p132 = scmp.eq.s32.totalorder %s22, 0
      %p133 = por %p131, %p132
      %p134 = scmp.le.s32.totalorder 1, %s16
      %p135 = scmp.lt.s32.totalorder %s16, 3
      %p136 = pnand %p134, %p135
      %p137 = pneg %p136
      // Predicated region
      $region9: #{tpu_custom_call.1} parent=5 // pred_check
        _
      $region10: #{tpu_custom_call.1} parent=5 // pred_check_branch
        %139 = sbr.rel (%p136) target = $region12
      $region11: #{tpu_custom_call.1} parent=5 // pred_region
        %s140 = ssub.s32 %s16, 1
        // Predicated region
        $region13: #{tpu_custom_call.1} parent=11 // pred_check
          %p141 = pneg %p77
        $region14: #{tpu_custom_call.1} parent=11 // pred_check_branch
          %143 = sbr.rel (%p141) target = $region16
        $region15: #{tpu_custom_call.1} parent=11 // pred_region
          %s145 = ssub.s32 5120, 5120
          %146 = vsyncadd [#allocation6], %s145
          %s147 = sshll.u32 [#allocation5], 4
          %s148 = int_to_ptr.vmem [resolvable:$true] %s147
          %153 = dma.hbm_to_vmem [thread:$0]  %s1, 5120, %s148, [#allocation6], 64, 64, 4
        $region16: #{tpu_custom_call.1} parent=11 // pred_fallthru
          _
        // Predicated region
        $region17: #{tpu_custom_call.1} parent=11 // pred_check
          %p154 = pneg %p98
        $region18: #{tpu_custom_call.1} parent=11 // pred_check_branch
          %156 = sbr.rel (%p154) target = $region20
        $region19: #{tpu_custom_call.1} parent=11 // pred_region
          %s158 = ssub.s32 16, 16
          %159 = vsyncadd [#allocation6], %s158
          %s161 = sshll.u32 [#allocation7], 4
          %s162 = int_to_ptr.vmem [resolvable:$true] %s161
          %164 = dma.hbm_to_vmem [thread:$0]  %s2, 16, %s162, [#allocation6]
        $region20: #{tpu_custom_call.1} parent=11 // pred_fallthru
          _
      $region12: #{tpu_custom_call.1} parent=5 // pred_fallthru
        _
      %p165 = scmp.lt.s32.totalorder %s16, 2
      // Predicated region
      $region21: #{tpu_custom_call.1} parent=5 // pred_check
        %p166 = pneg %p165
      $region22: #{tpu_custom_call.1} parent=5 // pred_check_branch
        %168 = sbr.rel (%p166) target = $region24
      $region23: #{tpu_custom_call.1} parent=5 // pred_region
        // Predicated region
        $region25: #{tpu_custom_call.1} parent=23 // pred_check
          %p169 = pneg %p50
        $region26: #{tpu_custom_call.1} parent=23 // pred_check_branch
          %171 = sbr.rel (%p169) target = $region28
        $region27: #{tpu_custom_call.1} parent=23 // pred_region
          %s172 = sand.u32 %s40, 1
          %s173 = scalar_lea.sflag [#allocation3], %s172
          %s174 = sand.u32 %s40, 1
          %s175 = smul.addr %s174, 12
          %s176 = scalar_lea.vmem [#allocation2], %s175
          %s178 = ssub.s32 192, 192
          %179 = vsyncadd %s173, %s178
          %s180 = smul.addr %s24, 3
          %s181 = smul.addr %s23, 3
          %s182 = sadd.s32 %s180, %s181
          %s183 = smul.addr %s182, 64
          %s184 = scalar_lea.hbm %s0, %s183
          %s185 = sshll.u32 %s176, 4
          %s186 = int_to_ptr.vmem [resolvable:$true] %s185
          %191 = dma.hbm_to_vmem [thread:$0]  %s184, 192, %s186, %s173, 64, 64, 4
        $region28: #{tpu_custom_call.1} parent=23 // pred_fallthru
          _
      $region24: #{tpu_custom_call.1} parent=5 // pred_fallthru
        _
      %p192 = scmp.le.s32.totalorder 1, %s16
      %p193 = scmp.lt.s32.totalorder %s16, 3
      %p194 = pnand %p192, %p193
      %p195 = pneg %p194
      // Predicated region
      $region29: #{tpu_custom_call.1} parent=5 // pred_check
        _
      $region30: #{tpu_custom_call.1} parent=5 // pred_check_branch
        %197 = sbr.rel (%p194) target = $region32
      $region31: #{tpu_custom_call.1} parent=5 // pred_region
        %s198 = ssub.s32 %s16, 1
        %s199 = sand.u32 %s43, 1
        %s200 = scalar_lea.sflag [#allocation3], %s199
        %s201 = sand.u32 %s43, 1
        %s202 = smul.addr %s201, 12
        %s203 = scalar_lea.vmem [#allocation2], %s202
        // Predicated region
        $region33: #{tpu_custom_call.1} parent=31 // pred_check
          %p204 = pneg %p56
        $region34: #{tpu_custom_call.1} parent=31 // pred_check_branch
          %206 = sbr.rel (%p204) target = $region36
        $region35: #{tpu_custom_call.1} parent=31 // pred_region
          %207 = dma.done %s200, 192
        $region36: #{tpu_custom_call.1} parent=31 // pred_fallthru
          _
        // Predicated region
        $region37: #{tpu_custom_call.1} parent=31 // pred_check
          %p208 = pneg %p77
        $region38: #{tpu_custom_call.1} parent=31 // pred_check_branch
          %210 = sbr.rel (%p208) target = $region40
        $region39: #{tpu_custom_call.1} parent=31 // pred_region
          %211 = dma.done [#allocation6], 5120
        $region40: #{tpu_custom_call.1} parent=31 // pred_fallthru
          _
        // Predicated region
        $region41: #{tpu_custom_call.1} parent=31 // pred_check
          %p212 = pneg %p98
        $region42: #{tpu_custom_call.1} parent=31 // pred_check_branch
          %214 = sbr.rel (%p212) target = $region44
        $region43: #{tpu_custom_call.1} parent=31 // pred_region
          %215 = dma.done [#allocation6], 16
        $region44: #{tpu_custom_call.1} parent=31 // pred_fallthru
          _
        %s216 = sand.u32 %s43, 1
        %s217 = scalar_lea.sflag [#allocation3], %s216
        %s218 = sand.u32 %s43, 1
        %s219 = smul.addr %s218, 12
        %s220 = scalar_lea.vmem [#allocation2], %s219
        %p221 = pneg %p56
        %p222 = pneg %p53
        %p223 = pneg %p77
        %p224 = pneg %p74
        %p225 = pneg %p98
        %p226 = pneg %p95
        %p227 = pneg %p126
        %p228 = pneg %p123
        %s229 = sand.u32 %s113, 1
        %s230 = scalar_lea.sflag [#allocation4], %s229
        %s231 = sand.u32 %s113, 1
        %s232 = smul.addr %s231, 16
        %s233 = scalar_lea.vmem [#allocation8], %s232
        %s234 = smul.u32 2, %s26
        %v236 = vld [vmem:[%s203] sm:$0xf]
        %v237 = vld [vmem:[%s203 + $0x4] sm:$0xf]
        %v238 = vld [vmem:[%s203] sm:$0xf]
        %v239 = vld [vmem:[%s203 + $0x4] sm:$0xf]
        %v240 = vld [vmem:[%s203 + $0x8] sm:$0x1]
        %v241 = vld [vmem:[%s203] sm:$0xe]
        %v242 = vld [vmem:[%s203 + $0x8] sm:$0x3]
        %v243 = vld [vmem:[%s203] sm:$0xc]
        %v246 = vunpack.c.l.b16 %v236
        %v247 = vunpack.c.l.b16 %v237
        %v248 = vpack.c.b16 %v247, %v246
        %v253 = vunpack.c.l.b16 %v238
        %v254 = vunpack.c.l.b16 %v239
        %v255 = vunpack.c.l.b16 %v240
        %v256 = vpack.c.b16 %v254, %v253
        %v257 = vpack.c.b16 %v255, %v255
        %vm258 = vsmask.f32 7424
        %v260 = vshrl.u32 %v256, 16
        %v262 = vshll.u32 %v256, 16
        %v264 = vrot.slane %v262, 1
        %v265 = vor.u32 %v260, %v264
        %v267 = vshll.u32 %v257, 16
        %v269 = vrot.slane %v267, 1
        %v270 = vsel %vm258, %v265, %v269
        %v273 = vunpack.c.l.b16 %v241
        %v274 = vpack.c.b16 %v254, %v273
        %vm275 = vcmask 1046528
        %v276 = vrot.slane %v274, 1
        %v277 = vrot.slane %v257, 1
        %v278 = vsel %vm275, %v276, %v277
        %v281 = vunpack.c.l.b16 %v242
        %v282 = vpack.c.b16 %v281, %v281
        %vm283 = vsmask.f32 6400
        %v285 = vshrl.u32 %v274, 16
        %v287 = vrot.slane %v285, 1
        %v288 = vshll.u32 %v274, 16
        %v290 = vrot.slane %v288, 2
        %v291 = vor.u32 %v287, %v290
        %v293 = vshrl.u32 %v282, 16
        %v295 = vrot.slane %v293, 1
        %v296 = vshll.u32 %v282, 16
        %v298 = vrot.slane %v296, 2
        %v299 = vor.u32 %v295, %v298
        %v300 = vsel %vm283, %v291, %v299
        %v303 = vunpack.c.l.b16 %v243
        %v304 = vpack.c.b16 %v254, %v303
        %vm305 = vcmask 1045504
        %v306 = vrot.slane %v304, 2
        %v307 = vrot.slane %v282, 2
        %v308 = vsel %vm305, %v306, %v307
        %v310 = vld [vmem:[#allocation5] sm:$0xf]
        %v311 = vld [vmem:[#allocation5 + $0x4] sm:$0xf]
        %v312 = vld [vmem:[#allocation5 + $0x8] sm:$0xf]
        %v313 = vld [vmem:[#allocation5 + $0xc] sm:$0xf]
        %v314 = vld [vmem:[#allocation5 + $0x10] sm:$0xf]
        %v315 = vld [vmem:[#allocation5 + $0x14] sm:$0xf]
        %v316 = vld [vmem:[#allocation5 + $0x18] sm:$0xf]
        %v317 = vld [vmem:[#allocation5 + $0x1c] sm:$0xf]
        %v318 = vld [vmem:[#allocation5 + $0x20] sm:$0xf]
        %v319 = vld [vmem:[#allocation5 + $0x24] sm:$0xf]
        %v320 = vld [vmem:[#allocation5 + $0x28] sm:$0xf]
        %v321 = vld [vmem:[#allocation5 + $0x2c] sm:$0xf]
        %v322 = vld [vmem:[#allocation5 + $0x30] sm:$0xf]
        %v323 = vld [vmem:[#allocation5 + $0x34] sm:$0xf]
        %v324 = vld [vmem:[#allocation5 + $0x38] sm:$0xf]
        %v325 = vld [vmem:[#allocation5 + $0x3c] sm:$0xf]
        %v326 = vld [vmem:[#allocation5 + $0x40] sm:$0xf]
        %v327 = vld [vmem:[#allocation5 + $0x44] sm:$0xf]
        %v328 = vld [vmem:[#allocation5 + $0x48] sm:$0xf]
        %v329 = vld [vmem:[#allocation5 + $0x4c] sm:$0xf]
        %v330 = vld [vmem:[#allocation5 + $0x50] sm:$0xf]
        %v331 = vld [vmem:[#allocation5 + $0x54] sm:$0xf]
        %v332 = vld [vmem:[#allocation5 + $0x58] sm:$0xf]
        %v333 = vld [vmem:[#allocation5 + $0x5c] sm:$0xf]
        %v334 = vld [vmem:[#allocation5 + $0x60] sm:$0xf]
        %v335 = vld [vmem:[#allocation5 + $0x64] sm:$0xf]
        %v336 = vld [vmem:[#allocation5 + $0x68] sm:$0xf]
        %v337 = vld [vmem:[#allocation5 + $0x6c] sm:$0xf]
        %v338 = vld [vmem:[#allocation5 + $0x70] sm:$0xf]
        %v339 = vld [vmem:[#allocation5 + $0x74] sm:$0xf]
        %v340 = vld [vmem:[#allocation5 + $0x78] sm:$0xf]
        %v341 = vld [vmem:[#allocation5 + $0x7c] sm:$0xf]
        %v342 = vld [vmem:[#allocation5 + $0x80] sm:$0xf]
        %v343 = vld [vmem:[#allocation5 + $0x84] sm:$0xf]
        %v344 = vld [vmem:[#allocation5 + $0x88] sm:$0xf]
        %v345 = vld [vmem:[#allocation5 + $0x8c] sm:$0xf]
        %v346 = vld [vmem:[#allocation5 + $0x90] sm:$0xf]
        %v347 = vld [vmem:[#allocation5 + $0x94] sm:$0xf]
        %v348 = vld [vmem:[#allocation5 + $0x98] sm:$0xf]
        %v349 = vld [vmem:[#allocation5 + $0x9c] sm:$0xf]
        %v350 = vld [vmem:[#allocation5 + $0xa0] sm:$0xf]
        %v351 = vld [vmem:[#allocation5 + $0xa4] sm:$0xf]
        %v352 = vld [vmem:[#allocation5 + $0xa8] sm:$0xf]
        %v353 = vld [vmem:[#allocation5 + $0xac] sm:$0xf]
        %v354 = vld [vmem:[#allocation5 + $0xb0] sm:$0xf]
        %v355 = vld [vmem:[#allocation5 + $0xb4] sm:$0xf]
        %v356 = vld [vmem:[#allocation5 + $0xb8] sm:$0xf]
        %v357 = vld [vmem:[#allocation5 + $0xbc] sm:$0xf]
        %v358 = vld [vmem:[#allocation5 + $0xc0] sm:$0xf]
        %v359 = vld [vmem:[#allocation5 + $0xc4] sm:$0xf]
        %v360 = vld [vmem:[#allocation5 + $0xc8] sm:$0xf]
        %v361 = vld [vmem:[#allocation5 + $0xcc] sm:$0xf]
        %v362 = vld [vmem:[#allocation5 + $0xd0] sm:$0xf]
        %v363 = vld [vmem:[#allocation5 + $0xd4] sm:$0xf]
        %v364 = vld [vmem:[#allocation5 + $0xd8] sm:$0xf]
        %v365 = vld [vmem:[#allocation5 + $0xdc] sm:$0xf]
        %v366 = vld [vmem:[#allocation5 + $0xe0] sm:$0xf]
        %v367 = vld [vmem:[#allocation5 + $0xe4] sm:$0xf]
        %v368 = vld [vmem:[#allocation5 + $0xe8] sm:$0xf]
        %v369 = vld [vmem:[#allocation5 + $0xec] sm:$0xf]
        %v370 = vld [vmem:[#allocation5 + $0xf0] sm:$0xf]
        %v371 = vld [vmem:[#allocation5 + $0xf4] sm:$0xf]
        %v372 = vld [vmem:[#allocation5 + $0xf8] sm:$0xf]
        %v373 = vld [vmem:[#allocation5 + $0xfc] sm:$0xf]
        %v374 = vld [vmem:[#allocation5 + $0x100] sm:$0xf]
        %v375 = vld [vmem:[#allocation5 + $0x104] sm:$0xf]
        %v376 = vld [vmem:[#allocation5 + $0x108] sm:$0xf]
        %v377 = vld [vmem:[#allocation5 + $0x10c] sm:$0xf]
        %v378 = vld [vmem:[#allocation5 + $0x110] sm:$0xf]
        %v379 = vld [vmem:[#allocation5 + $0x114] sm:$0xf]
        %v380 = vld [vmem:[#allocation5 + $0x118] sm:$0xf]
        %v381 = vld [vmem:[#allocation5 + $0x11c] sm:$0xf]
        %v382 = vld [vmem:[#allocation5 + $0x120] sm:$0xf]
        %v383 = vld [vmem:[#allocation5 + $0x124] sm:$0xf]
        %v384 = vld [vmem:[#allocation5 + $0x128] sm:$0xf]
        %v385 = vld [vmem:[#allocation5 + $0x12c] sm:$0xf]
        %v386 = vld [vmem:[#allocation5 + $0x130] sm:$0xf]
        %v387 = vld [vmem:[#allocation5 + $0x134] sm:$0xf]
        %v388 = vld [vmem:[#allocation5 + $0x138] sm:$0xf]
        %v389 = vld [vmem:[#allocation5 + $0x13c] sm:$0xf]
        %v390 = vld [vmem:[#allocation7] sm:$0x1]
        %v392 = vlaneseq
        %v393 = vshrl.u32 %v392, 7
        %v394 = vsub.s32 0, %v393
        %v395 = vrot.slane %v390, %v394
        %v477 = vunpack.c.l.b16 %v310
        %v478 = vunpack.c.l.b16 %v311
        %v479 = vunpack.c.l.b16 %v312
        %v480 = vunpack.c.l.b16 %v313
        %v481 = vunpack.c.l.b16 %v314
        %v482 = vunpack.c.l.b16 %v315
        %v483 = vunpack.c.l.b16 %v316
        %v484 = vunpack.c.l.b16 %v317
        %v485 = vunpack.c.l.b16 %v318
        %v486 = vunpack.c.l.b16 %v319
        %v487 = vunpack.c.l.b16 %v320
        %v488 = vunpack.c.l.b16 %v321
        %v489 = vunpack.c.l.b16 %v322
        %v490 = vunpack.c.l.b16 %v323
        %v491 = vunpack.c.l.b16 %v324
        %v492 = vunpack.c.l.b16 %v325
        %v493 = vunpack.c.l.b16 %v326
        %v494 = vunpack.c.l.b16 %v327
        %v495 = vunpack.c.l.b16 %v328
        %v496 = vunpack.c.l.b16 %v329
        %v497 = vunpack.c.l.b16 %v330
        %v498 = vunpack.c.l.b16 %v331
        %v499 = vunpack.c.l.b16 %v332
        %v500 = vunpack.c.l.b16 %v333
        %v501 = vunpack.c.l.b16 %v334
        %v502 = vunpack.c.l.b16 %v335
        %v503 = vunpack.c.l.b16 %v336
        %v504 = vunpack.c.l.b16 %v337
        %v505 = vunpack.c.l.b16 %v338
        %v506 = vunpack.c.l.b16 %v339
        %v507 = vunpack.c.l.b16 %v340
        %v508 = vunpack.c.l.b16 %v341
        %v509 = vunpack.c.l.b16 %v342
        %v510 = vunpack.c.l.b16 %v343
        %v511 = vunpack.c.l.b16 %v344
        %v512 = vunpack.c.l.b16 %v345
        %v513 = vunpack.c.l.b16 %v346
        %v514 = vunpack.c.l.b16 %v347
        %v515 = vunpack.c.l.b16 %v348
        %v516 = vunpack.c.l.b16 %v349
        %v517 = vunpack.c.l.b16 %v350
        %v518 = vunpack.c.l.b16 %v351
        %v519 = vunpack.c.l.b16 %v352
        %v520 = vunpack.c.l.b16 %v353
        %v521 = vunpack.c.l.b16 %v354
        %v522 = vunpack.c.l.b16 %v355
        %v523 = vunpack.c.l.b16 %v356
        %v524 = vunpack.c.l.b16 %v357
        %v525 = vunpack.c.l.b16 %v358
        %v526 = vunpack.c.l.b16 %v359
        %v527 = vunpack.c.l.b16 %v360
        %v528 = vunpack.c.l.b16 %v361
        %v529 = vunpack.c.l.b16 %v362
        %v530 = vunpack.c.l.b16 %v363
        %v531 = vunpack.c.l.b16 %v364
        %v532 = vunpack.c.l.b16 %v365
        %v533 = vunpack.c.l.b16 %v366
        %v534 = vunpack.c.l.b16 %v367
        %v535 = vunpack.c.l.b16 %v368
        %v536 = vunpack.c.l.b16 %v369
        %v537 = vunpack.c.l.b16 %v370
        %v538 = vunpack.c.l.b16 %v371
        %v539 = vunpack.c.l.b16 %v372
        %v540 = vunpack.c.l.b16 %v373
        %v541 = vunpack.c.l.b16 %v374
        %v542 = vunpack.c.l.b16 %v375
        %v543 = vunpack.c.l.b16 %v376
        %v544 = vunpack.c.l.b16 %v377
        %v545 = vunpack.c.l.b16 %v378
        %v546 = vunpack.c.l.b16 %v379
        %v547 = vunpack.c.l.b16 %v380
        %v548 = vunpack.c.l.b16 %v381
        %v549 = vunpack.c.l.b16 %v382
        %v550 = vunpack.c.l.b16 %v383
        %v551 = vunpack.c.l.b16 %v384
        %v552 = vunpack.c.l.b16 %v385
        %v553 = vunpack.c.l.b16 %v386
        %v554 = vunpack.c.l.b16 %v387
        %v555 = vunpack.c.l.b16 %v388
        %v556 = vunpack.c.l.b16 %v389
        %v557 = vpack.c.b16 %v478, %v477
        %v558 = vpack.c.b16 %v480, %v479
        %v559 = vpack.c.b16 %v482, %v481
        %v560 = vpack.c.b16 %v484, %v483
        %v561 = vpack.c.b16 %v486, %v485
        %v562 = vpack.c.b16 %v488, %v487
        %v563 = vpack.c.b16 %v490, %v489
        %v564 = vpack.c.b16 %v492, %v491
        %v565 = vpack.c.b16 %v494, %v493
        %v566 = vpack.c.b16 %v496, %v495
        %v567 = vpack.c.b16 %v498, %v497
        %v568 = vpack.c.b16 %v500, %v499
        %v569 = vpack.c.b16 %v502, %v501
        %v570 = vpack.c.b16 %v504, %v503
        %v571 = vpack.c.b16 %v506, %v505
        %v572 = vpack.c.b16 %v508, %v507
        %v573 = vpack.c.b16 %v510, %v509
        %v574 = vpack.c.b16 %v512, %v511
        %v575 = vpack.c.b16 %v514, %v513
        %v576 = vpack.c.b16 %v516, %v515
        %v577 = vpack.c.b16 %v518, %v517
        %v578 = vpack.c.b16 %v520, %v519
        %v579 = vpack.c.b16 %v522, %v521
        %v580 = vpack.c.b16 %v524, %v523
        %v581 = vpack.c.b16 %v526, %v525
        %v582 = vpack.c.b16 %v528, %v527
        %v583 = vpack.c.b16 %v530, %v529
        %v584 = vpack.c.b16 %v532, %v531
        %v585 = vpack.c.b16 %v534, %v533
        %v586 = vpack.c.b16 %v536, %v535
        %v587 = vpack.c.b16 %v538, %v537
        %v588 = vpack.c.b16 %v540, %v539
        %v589 = vpack.c.b16 %v542, %v541
        %v590 = vpack.c.b16 %v544, %v543
        %v591 = vpack.c.b16 %v546, %v545
        %v592 = vpack.c.b16 %v548, %v547
        %v593 = vpack.c.b16 %v550, %v549
        %v594 = vpack.c.b16 %v552, %v551
        %v595 = vpack.c.b16 %v554, %v553
        %v596 = vpack.c.b16 %v556, %v555
        %637 = vmatprep.subr.bf16.mxu0 0
        %638 = vmatpush1.bf16.msra.mxu0 %v557
        %639 = vmatprep.subr.bf16.mxu0 0
        %640 = vmatpush1.bf16.msra.mxu0 %v558
        %641 = vmatprep.subr.bf16.mxu0 0
        %642 = vmatpush1.bf16.msra.mxu0 %v559
        %643 = vmatprep.subr.bf16.mxu0 0
        %644 = vmatpush1.bf16.msra.mxu0 %v560
        %645 = vmatprep.subr.bf16.mxu0 0
        %646 = vmatpush1.bf16.msra.mxu0 %v561
        %647 = vmatprep.subr.bf16.mxu0 0
        %648 = vmatpush1.bf16.msra.mxu0 %v562
        %649 = vmatprep.subr.bf16.mxu0 0
        %650 = vmatpush1.bf16.msra.mxu0 %v563
        %651 = vmatprep.subr.bf16.mxu0 0
        %652 = vmatpush1.bf16.msra.mxu0 %v564
        %653 = vmatprep.subr.bf16.mxu0 0
        %654 = vmatpush1.bf16.msra.mxu0 %v565
        %655 = vmatprep.subr.bf16.mxu0 0
        %656 = vmatpush1.bf16.msra.mxu0 %v566
        %657 = vmatprep.subr.bf16.mxu0 0
        %658 = vmatpush1.bf16.msra.mxu0 %v567
        %659 = vmatprep.subr.bf16.mxu0 0
        %660 = vmatpush1.bf16.msra.mxu0 %v568
        %661 = vmatprep.subr.bf16.mxu0 0
        %662 = vmatpush1.bf16.msra.mxu0 %v569
        %663 = vmatprep.subr.bf16.mxu0 0
        %664 = vmatpush1.bf16.msra.mxu0 %v570
        %665 = vmatprep.subr.bf16.mxu0 0
        %666 = vmatpush1.bf16.msra.mxu0 %v571
        %667 = vmatprep.subr.bf16.mxu0 0
        %668 = vmatpush1.bf16.msra.mxu0 %v572
        %669 = vmatprep.mubr.bf16.mxu0 %v270
        %670 = vmatmul.mubr.bf16.gmra.mrb[0].mxu0 %v248
        %v671 = vpop.f32.mrb[0].mxu0
        %v672 = vadd.f32 %v395, %v671
        %v673 = vpop.f32.mrb[0].mxu0
        %v674 = vpop.f32.mrb[0].mxu0
        %v675 = vadd.f32 %v395, %v674
        %v676 = vpop.f32.mrb[0].mxu0
        %677 = vdwg.mxu0
        %678 = vmatprep.subr.bf16.mxu0 0
        %679 = vmatpush1.bf16.msra.mxu0 %v573
        %680 = vmatprep.subr.bf16.mxu0 0
        %681 = vmatpush1.bf16.msra.mxu0 %v574
        %682 = vmatprep.subr.bf16.mxu0 0
        %683 = vmatpush1.bf16.msra.mxu0 %v575
        %684 = vmatprep.subr.bf16.mxu0 0
        %685 = vmatpush1.bf16.msra.mxu0 %v576
        %686 = vmatprep.subr.bf16.mxu0 0
        %687 = vmatpush1.bf16.msra.mxu0 %v577
        %688 = vmatprep.subr.bf16.mxu0 0
        %689 = vmatpush1.bf16.msra.mxu0 %v578
        %690 = vmatprep.subr.bf16.mxu0 0
        %691 = vmatpush1.bf16.msra.mxu0 %v579
        %692 = vmatprep.subr.bf16.mxu0 0
        %693 = vmatpush1.bf16.msra.mxu0 %v580
        %694 = vmatprep.subr.bf16.mxu0 0
        %695 = vmatpush1.bf16.msra.mxu0 %v581
        %696 = vmatprep.subr.bf16.mxu0 0
        %697 = vmatpush1.bf16.msra.mxu0 %v582
        %698 = vmatprep.subr.bf16.mxu0 0
        %699 = vmatpush1.bf16.msra.mxu0 %v583
        %700 = vmatprep.subr.bf16.mxu0 0
        %701 = vmatpush1.bf16.msra.mxu0 %v584
        %702 = vmatprep.subr.bf16.mxu0 0
        %703 = vmatpush1.bf16.msra.mxu0 %v585
        %704 = vmatprep.subr.bf16.mxu0 0
        %705 = vmatpush1.bf16.msra.mxu0 %v586
        %706 = vmatprep.subr.bf16.mxu0 0
        %707 = vmatpush1.bf16.msra.mxu0 %v587
        %708 = vmatprep.subr.bf16.mxu0 0
        %709 = vmatpush1.bf16.msra.mxu0 %v588
        %710 = vmatprep.mubr.bf16.mxu0 %v300
        %711 = vmatmul.mubr.bf16.gmra.mrb[0].mxu0 %v278
        %v712 = vpop.f32.mrb[0].mxu0
        %v713 = vadd.f32 %v672, %v712
        %v714 = vpop.f32.mrb[0].mxu0
        %v715 = vpop.f32.mrb[0].mxu0
        %v716 = vadd.f32 %v675, %v715
        %v717 = vpop.f32.mrb[0].mxu0
        %718 = vdwg.mxu0
        %719 = vmatprep.subr.bf16.mxu0 0
        %720 = vmatpush1.bf16.msra.mxu0 %v589
        %721 = vmatprep.subr.bf16.mxu0 0
        %722 = vmatpush1.bf16.msra.mxu0 %v590
        %723 = vmatprep.subr.bf16.mxu0 0
        %724 = vmatpush1.bf16.msra.mxu0 %v591
        %725 = vmatprep.subr.bf16.mxu0 0
        %726 = vmatpush1.bf16.msra.mxu0 %v592
        %727 = vmatprep.subr.bf16.mxu0 0
        %728 = vmatpush1.bf16.msra.mxu0 %v593
        %729 = vmatprep.subr.bf16.mxu0 0
        %730 = vmatpush1.bf16.msra.mxu0 %v594
        %731 = vmatprep.subr.bf16.mxu0 0
        %732 = vmatpush1.bf16.msra.mxu0 %v595
        %733 = vmatprep.subr.bf16.mxu0 0
        %734 = vmatpush1.bf16.msra.mxu0 %v596
        %735 = vmatprep.subr.bf16.mxu0 0
        %736 = vmatpush1.bf16.msra.mxu0 0
        %737 = vmatprep.subr.bf16.mxu0 0
        %738 = vmatpush1.bf16.msra.mxu0 0
        %739 = vmatprep.subr.bf16.mxu0 0
        %740 = vmatpush1.bf16.msra.mxu0 0
        %741 = vmatprep.subr.bf16.mxu0 0
        %742 = vmatpush1.bf16.msra.mxu0 0
        %743 = vmatprep.subr.bf16.mxu0 0
        %744 = vmatpush1.bf16.msra.mxu0 0
        %745 = vmatprep.subr.bf16.mxu0 0
        %746 = vmatpush1.bf16.msra.mxu0 0
        %747 = vmatprep.subr.bf16.mxu0 0
        %748 = vmatpush1.bf16.msra.mxu0 0
        %749 = vmatprep.subr.bf16.mxu0 0
        %750 = vmatpush1.bf16.msra.mxu0 0
        %751 = vmatprep.mubr.bf16.mxu0 0
        %752 = vmatmul.mubr.bf16.gmra.mrb[0].mxu0 %v308
        %v753 = vpop.f32.mrb[0].mxu0
        %v754 = vadd.f32 %v713, %v753
        %v755 = vpop.f32.mrb[0].mxu0
        %v756 = vpop.f32.mrb[0].mxu0
        %v757 = vadd.f32 %v716, %v756
        %v758 = vpop.f32.mrb[0].mxu0
        %759 = vdwg.mxu0
        %v760 = vmax.f32 %v754, 0.0
        %v761 = vmax.f32 %v757, 0.0
        %762 = vst [vmem:[%s233] sm:$0xff] %v760
        %763 = vst [vmem:[%s233 + $0x8] sm:$0xff] %v761
        %s764 = sand.u32 %s113, 1
        %s765 = scalar_lea.sflag [#allocation4], %s764
        %s766 = sand.u32 %s113, 1
        %s767 = smul.addr %s766, 16
        %s768 = scalar_lea.vmem [#allocation8], %s767
        // Predicated region
        $region45: #{tpu_custom_call.1} parent=31 // pred_check
          %p769 = pneg %p123
        $region46: #{tpu_custom_call.1} parent=31 // pred_check_branch
          %771 = sbr.rel (%p769) target = $region48
        $region47: #{tpu_custom_call.1} parent=31 // pred_region
          %s772 = smul.u32 2, %s26
          %s774 = ssub.s32 256, 256
          %775 = vsyncadd %s765, %s774
          %s776 = smul.addr %s25, 2
          %s777 = sadd.s32 %s772, %s776
          %s778 = smul.addr %s777, 128
          %s779 = scalar_lea.hbm %s3, %s778
          %s780 = sshll.u32 %s768, 4
          %s781 = int_to_ptr.vmem [resolvable:$true] %s780
          %786 = dma.vmem_to_hbm [thread:$0]  %s781, 256, %s779, %s765, 128, 128, 8
        $region48: #{tpu_custom_call.1} parent=31 // pred_fallthru
          _
      $region32: #{tpu_custom_call.1} parent=5 // pred_fallthru
        _
      %p787 = scmp.le.s32.totalorder 2, %s16
      // Predicated region
      $region49: #{tpu_custom_call.1} parent=5 // pred_check
        %p788 = pneg %p787
      $region50: #{tpu_custom_call.1} parent=5 // pred_check_branch
        %790 = sbr.rel (%p788) target = $region52
      $region51: #{tpu_custom_call.1} parent=5 // pred_region
        %s791 = ssub.s32 %s16, 2
        // Predicated region
        $region53: #{tpu_custom_call.1} parent=51 // pred_check
          %p792 = pneg %p129
        $region54: #{tpu_custom_call.1} parent=51 // pred_check_branch
          %794 = sbr.rel (%p792) target = $region56
        $region55: #{tpu_custom_call.1} parent=51 // pred_region
          %s795 = sand.u32 %s114, 1
          %s796 = scalar_lea.sflag [#allocation4], %s795
          %s797 = sand.u32 %s114, 1
          %s798 = smul.addr %s797, 16
          %s799 = scalar_lea.vmem [#allocation8], %s798
          %800 = dma.done %s796, 256
        $region56: #{tpu_custom_call.1} parent=51 // pred_fallthru
          _
      $region52: #{tpu_custom_call.1} parent=5 // pred_fallthru
        _
    $region6: #{tpu_custom_call.1} parent=1 // loop_footer
      %s20 = sadd.s32 1, %s16
    $region7: #{tpu_custom_call.1} parent=1 // loop_footer_branch
      %15 = sbr.rel target = $region3
    $region8: #{tpu_custom_call.1} parent=1 // loop_exit
      _
    %801 = vsyncpa [#allocation3], 1
    %s802 = scalar_lea.sflag [#allocation3], 1
    %803 = vsyncpa %s802, 1
    %804 = vsyncpa [#allocation6], 1
    %805 = vsyncpa [#allocation4], 1
    %s806 = scalar_lea.sflag [#allocation4], 1
    %807 = vsyncpa %s806, 1

// kernel: tpu_custom_call.1
$region0: #{tpu_custom_call.1}
  #allocation0 [shape = 'u32[]', space=smem, size = 0x4, offset = 0x4, fixed_abs, tag = 'smem constant byte address 0x4 - core index']
  #allocation1 [shape = 'u32[144,128]{1,0:T(1,128)}', space=vmem, size = 0x12000, scoped, tag = 'internal scratch']
  %s0 = inlined_call_operand.hbm [shape: bf16[2,1,24,128], index: 0, kind: input, shape index: {}]
  %s1 = inlined_call_operand.hbm [shape: bf16[640,128], index: 1, kind: input, shape index: {}]
  %s2 = inlined_call_operand.hbm [shape: f32[1,128], index: 2, kind: input, shape index: {}]
  %s3 = inlined_call_operand.hbm [shape: f32[2,16,128], index: 3, kind: output, shape index: {}]
  %s4 = sld [smem:[#allocation0]]
  $region57: #{tpu_custom_call.1} parent=0
    _
  %s6 = ssub.s32 1, %s4
  %s7 = scalar_select 0, %s6, %s4
  $region1: #{tpu_custom_call.1} parent=0
    #allocation2 [shape = 'u8[12288]{0}', space=vmem, size = 0x3000, scoped, tag = 'input window, operand 0']
    #allocation3 [shape = 's32[2]{0}', space=sflag, size = 0x8, scoped, tag = 'scoped memory for tpu_custom_call.1']
    #allocation4 [shape = 's32[2]{0}', space=sflag, size = 0x8, scoped, tag = 'scoped memory for tpu_custom_call.1']
    #allocation5 [shape = 'u8[163840]{0}', space=vmem, size = 0x28000, scoped, tag = 'input window, operand 1, single buffered']
    #allocation6 [shape = 's32[1]{0}', space=sflag, size = 0x4, scoped, tag = 'scoped memory for tpu_custom_call.1']
    #allocation7 [shape = 'u8[512]{0}', space=vmem, size = 0x400, scoped, tag = 'input window, operand 2, single buffered']
    #allocation8 [shape = 'u8[16384]{0}', space=vmem, size = 0x4000, scoped, tag = 'output window, operand 0']
    %8 = vsyncpa [#allocation3], 0
    %s9 = scalar_lea.sflag [#allocation3], 1
    %10 = vsyncpa %s9, 0
    %11 = vsyncpa [#allocation6], 0
    %12 = vsyncpa [#allocation4], 0
    %s13 = scalar_lea.sflag [#allocation4], 1
    %14 = vsyncpa %s13, 0
    loop: start=0, step=1, limit=4
    $region2: #{tpu_custom_call.1} parent=1 // loop_pre_header
      _
    $region3: #{tpu_custom_call.1} parent=1 // loop_header
      %s16 = sphi 0, %s20
      %p17 = scmp.ge.s32.totalorder %s16, 4
      %s23 = sphi 0, %s35
      %s24 = sphi 0, %s31
      %s25 = sphi 0, %s23
      %s26 = sphi 0, %s24
      %s27 = sphi 0, %s25
      %s28 = sphi 0, %s26
      %s40 = sphi 0, %s42
      %s43 = sphi 0, %s40
      %s44 = sphi 0, %s43
      %s60 = sphi 0, %s44
      %s64 = sphi 0, %s64
      %s66 = sphi 0, %s64
      %s67 = sphi 0, %s66
      %s81 = sphi 0, %s67
      %s85 = sphi 0, %s85
      %s87 = sphi 0, %s85
      %s88 = sphi 0, %s87
      %s102 = sphi 0, %s88
      %s110 = sphi 0, %s112
      %s113 = sphi 0, %s110
      %s114 = sphi 0, %s113
      %s130 = sphi 0, %s114
    $region4: #{tpu_custom_call.1} parent=1 // loop_header_branch
      %19 = sbr.rel (%p17) target = $region8
    $region5: #{tpu_custom_call.1} parent=1 // loop_body
      %s21 = ssub.s32 %s16, 1
      %s22 = ssub.s32 %s16, 2
      %s29 = sadd.s32 1, %s24
      %p30 = scmp.ge.s32.totalorder %s29, 1
      %s31 = scalar_select %p30, 0, %s29
      %s32 = sadd.s32 1, %s23
      %s33 = scalar_select %p30, %s32, %s23
      %p34 = scmp.ge.s32.totalorder %s33, 2
      %s35 = scalar_select %p34, 0, %s33
      %s36 = ssub.s32 %s23, %s35
      %s37 = ssub.s32 %s24, %s31
      %s38 = sor.u32 %s36, %s37
      %p39 = scmp.eq.s32.totalorder %s38, 0
      %s41 = sadd.s32 %s40, 1
      %s42 = scalar_select %p39, %s40, %s41
      %p45 = pneg %p39
      %p46 = scmp.eq.s32.totalorder %s16, 1
      %p47 = por %p45, %p46
      %p48 = scmp.ne.s32.totalorder %s40, %s43
      %p49 = scmp.eq.s32.totalorder %s16, 0
      %p50 = por %p48, %p49
      %p51 = scmp.ne.s32.totalorder %s40, %s43
      %p52 = scmp.eq.s32.totalorder %s21, 1
      %p53 = por %p51, %p52
      %p54 = scmp.ne.s32.totalorder %s43, %s44
      %p55 = scmp.eq.s32.totalorder %s21, 0
      %p56 = por %p54, %p55
      %p57 = scmp.ne.s32.totalorder %s43, %s44
      %p58 = scmp.eq.s32.totalorder %s22, 1
      %p59 = por %p57, %p58
      %p61 = scmp.ne.s32.totalorder %s44, %s60
      %p62 = scmp.eq.s32.totalorder %s22, 0
      %p63 = por %p61, %p62
      %s65 = sadd.s32 %s64, 1
      %p68 = scmp.eq.s32.totalorder %s16, 1
      %p69 = scmp.ne.s32.totalorder %s64, %s66
      %p70 = scmp.eq.s32.totalorder %s16, 0
      %p71 = por %p69, %p70
      %p72 = scmp.ne.s32.totalorder %s64, %s66
      %p73 = scmp.eq.s32.totalorder %s21, 1
      %p74 = por %p72, %p73
      %p75 = scmp.ne.s32.totalorder %s66, %s67
      %p76 = scmp.eq.s32.totalorder %s21, 0
      %p77 = por %p75, %p76
      %p78 = scmp.ne.s32.totalorder %s66, %s67
      %p79 = scmp.eq.s32.totalorder %s22, 1
      %p80 = por %p78, %p79
      %p82 = scmp.ne.s32.totalorder %s67, %s81
      %p83 = scmp.eq.s32.totalorder %s22, 0
      %p84 = por %p82, %p83
      %s86 = sadd.s32 %s85, 1
      %p89 = scmp.eq.s32.totalorder %s16, 1
      %p90 = scmp.ne.s32.totalorder %s85, %s87
      %p91 = scmp.eq.s32.totalorder %s16, 0
      %p92 = por %p90, %p91
      %p93 = scmp.ne.s32.totalorder %s85, %s87
      %p94 = scmp.eq.s32.totalorder %s21, 1
      %p95 = por %p93, %p94
      %p96 = scmp.ne.s32.totalorder %s87, %s88
      %p97 = scmp.eq.s32.totalorder %s21, 0
      %p98 = por %p96, %p97
      %p99 = scmp.ne.s32.totalorder %s87, %s88
      %p100 = scmp.eq.s32.totalorder %s22, 1
      %p101 = por %p99, %p100
      %p103 = scmp.ne.s32.totalorder %s88, %s102
      %p104 = scmp.eq.s32.totalorder %s22, 0
      %p105 = por %p103, %p104
      %s106 = ssub.s32 %s23, %s35
      %s107 = ssub.s32 %s24, %s31
      %s108 = sor.u32 %s106, %s107
      %p109 = scmp.eq.s32.totalorder %s108, 0
      %s111 = sadd.s32 %s110, 1
      %s112 = scalar_select %p109, %s110, %s111
      %p115 = pneg %p109
      %p116 = scmp.eq.s32.totalorder %s16, 1
      %p117 = por %p115, %p116
      %p118 = scmp.ne.s32.totalorder %s110, %s113
      %p119 = scmp.eq.s32.totalorder %s16, 0
      %p120 = por %p118, %p119
      %p121 = scmp.ne.s32.totalorder %s110, %s113
      %p122 = scmp.eq.s32.totalorder %s21, 1
      %p123 = por %p121, %p122
      %p124 = scmp.ne.s32.totalorder %s113, %s114
      %p125 = scmp.eq.s32.totalorder %s21, 0
      %p126 = por %p124, %p125
      %p127 = scmp.ne.s32.totalorder %s113, %s114
      %p128 = scmp.eq.s32.totalorder %s22, 1
      %p129 = por %p127, %p128
      %p131 = scmp.ne.s32.totalorder %s114, %s130
      %p132 = scmp.eq.s32.totalorder %s22, 0
      %p133 = por %p131, %p132
      %p134 = scmp.le.s32.totalorder 1, %s16
      %p135 = scmp.lt.s32.totalorder %s16, 3
      %p136 = pnand %p134, %p135
      %p137 = pneg %p136
      // Predicated region
      $region9: #{tpu_custom_call.1} parent=5 // pred_check
        _
      $region10: #{tpu_custom_call.1} parent=5 // pred_check_branch
        %139 = sbr.rel (%p136) target = $region12
      $region11: #{tpu_custom_call.1} parent=5 // pred_region
        %s140 = ssub.s32 %s16, 1
        // Predicated region
        $region13: #{tpu_custom_call.1} parent=11 // pred_check
          %p141 = pneg %p77
        $region14: #{tpu_custom_call.1} parent=11 // pred_check_branch
          %143 = sbr.rel (%p141) target = $region16
        $region15: #{tpu_custom_call.1} parent=11 // pred_region
          %s145 = ssub.s32 5120, 5120
          %146 = vsyncadd [#allocation6], %s145
          %s147 = sshll.u32 [#allocation5], 4
          %s148 = int_to_ptr.vmem [resolvable:$true] %s147
          %153 = dma.hbm_to_vmem [thread:$0]  %s1, 5120, %s148, [#allocation6], 64, 64, 4
        $region16: #{tpu_custom_call.1} parent=11 // pred_fallthru
          _
        // Predicated region
        $region17: #{tpu_custom_call.1} parent=11 // pred_check
          %p154 = pneg %p98
        $region18: #{tpu_custom_call.1} parent=11 // pred_check_branch
          %156 = sbr.rel (%p154) target = $region20
        $region19: #{tpu_custom_call.1} parent=11 // pred_region
          %s158 = ssub.s32 16, 16
          %159 = vsyncadd [#allocation6], %s158
          %s161 = sshll.u32 [#allocation7], 4
          %s162 = int_to_ptr.vmem [resolvable:$true] %s161
          %164 = dma.hbm_to_vmem [thread:$0]  %s2, 16, %s162, [#allocation6]
        $region20: #{tpu_custom_call.1} parent=11 // pred_fallthru
          _
      $region12: #{tpu_custom_call.1} parent=5 // pred_fallthru
        _
      %p165 = scmp.lt.s32.totalorder %s16, 2
      // Predicated region
      $region21: #{tpu_custom_call.1} parent=5 // pred_check
        %p166 = pneg %p165
      $region22: #{tpu_custom_call.1} parent=5 // pred_check_branch
        %168 = sbr.rel (%p166) target = $region24
      $region23: #{tpu_custom_call.1} parent=5 // pred_region
        // Predicated region
        $region25: #{tpu_custom_call.1} parent=23 // pred_check
          %p169 = pneg %p50
        $region26: #{tpu_custom_call.1} parent=23 // pred_check_branch
          %171 = sbr.rel (%p169) target = $region28
        $region27: #{tpu_custom_call.1} parent=23 // pred_region
          %s172 = sand.u32 %s40, 1
          %s173 = scalar_lea.sflag [#allocation3], %s172
          %s174 = sand.u32 %s40, 1
          %s175 = smul.addr %s174, 12
          %s176 = scalar_lea.vmem [#allocation2], %s175
          %s178 = ssub.s32 192, 192
          %179 = vsyncadd %s173, %s178
          %s180 = smul.addr %s24, 3
          %s181 = smul.addr %s23, 3
          %s182 = sadd.s32 %s180, %s181
          %s183 = smul.addr %s182, 64
          %s184 = scalar_lea.hbm %s0, %s183
          %s185 = sshll.u32 %s176, 4
          %s186 = int_to_ptr.vmem [resolvable:$true] %s185
          %191 = dma.hbm_to_vmem [thread:$0]  %s184, 192, %s186, %s173, 64, 64, 4
        $region28: #{tpu_custom_call.1} parent=23 // pred_fallthru
          _
      $region24: #{tpu_custom_call.1} parent=5 // pred_fallthru
        _
      %p192 = scmp.le.s32.totalorder 1, %s16
      %p193 = scmp.lt.s32.totalorder %s16, 3
      %p194 = pnand %p192, %p193
      %p195 = pneg %p194
      // Predicated region
      $region29: #{tpu_custom_call.1} parent=5 // pred_check
        _
      $region30: #{tpu_custom_call.1} parent=5 // pred_check_branch
        %197 = sbr.rel (%p194) target = $region32
      $region31: #{tpu_custom_call.1} parent=5 // pred_region
        %s198 = ssub.s32 %s16, 1
        %s199 = sand.u32 %s43, 1
        %s200 = scalar_lea.sflag [#allocation3], %s199
        %s201 = sand.u32 %s43, 1
        %s202 = smul.addr %s201, 12
        %s203 = scalar_lea.vmem [#allocation2], %s202
        // Predicated region
        $region33: #{tpu_custom_call.1} parent=31 // pred_check
          %p204 = pneg %p56
        $region34: #{tpu_custom_call.1} parent=31 // pred_check_branch
          %206 = sbr.rel (%p204) target = $region36
        $region35: #{tpu_custom_call.1} parent=31 // pred_region
          %207 = dma.done %s200, 192
        $region36: #{tpu_custom_call.1} parent=31 // pred_fallthru
          _
        // Predicated region
        $region37: #{tpu_custom_call.1} parent=31 // pred_check
          %p208 = pneg %p77
        $region38: #{tpu_custom_call.1} parent=31 // pred_check_branch
          %210 = sbr.rel (%p208) target = $region40
        $region39: #{tpu_custom_call.1} parent=31 // pred_region
          %211 = dma.done [#allocation6], 5120
        $region40: #{tpu_custom_call.1} parent=31 // pred_fallthru
          _
        // Predicated region
        $region41: #{tpu_custom_call.1} parent=31 // pred_check
          %p212 = pneg %p98
        $region42: #{tpu_custom_call.1} parent=31 // pred_check_branch
          %214 = sbr.rel (%p212) target = $region44
        $region43: #{tpu_custom_call.1} parent=31 // pred_region
          %215 = dma.done [#allocation6], 16
        $region44: #{tpu_custom_call.1} parent=31 // pred_fallthru
          _
        %s216 = sand.u32 %s43, 1
        %s217 = scalar_lea.sflag [#allocation3], %s216
        %s218 = sand.u32 %s43, 1
        %s219 = smul.addr %s218, 12
        %s220 = scalar_lea.vmem [#allocation2], %s219
        %p221 = pneg %p56
        %p222 = pneg %p53
        %p223 = pneg %p77
        %p224 = pneg %p74
        %p225 = pneg %p98
        %p226 = pneg %p95
        %p227 = pneg %p126
        %p228 = pneg %p123
        %s229 = sand.u32 %s113, 1
        %s230 = scalar_lea.sflag [#allocation4], %s229
        %s231 = sand.u32 %s113, 1
        %s232 = smul.addr %s231, 16
        %s233 = scalar_lea.vmem [#allocation8], %s232
        %s234 = smul.u32 2, %s26
        %v236 = vld [vmem:[%s203] sm:$0xf]
        %v237 = vld [vmem:[%s203 + $0x4] sm:$0xf]
        %v238 = vld [vmem:[%s203] sm:$0xf]
        %v239 = vld [vmem:[%s203 + $0x4] sm:$0xf]
        %v240 = vld [vmem:[%s203 + $0x8] sm:$0x1]
        %v241 = vld [vmem:[%s203] sm:$0xe]
        %v242 = vld [vmem:[%s203 + $0x8] sm:$0x3]
        %v243 = vld [vmem:[%s203] sm:$0xc]
        %v246 = vunpack.c.l.b16 %v236
        %v247 = vunpack.c.l.b16 %v237
        %v248 = vpack.c.b16 %v247, %v246
        %v253 = vunpack.c.l.b16 %v238
        %v254 = vunpack.c.l.b16 %v239
        %v255 = vunpack.c.l.b16 %v240
        %v256 = vpack.c.b16 %v254, %v253
        %v257 = vpack.c.b16 %v255, %v255
        %vm258 = vsmask.f32 7424
        %v260 = vshrl.u32 %v256, 16
        %v262 = vshll.u32 %v256, 16
        %v264 = vrot.slane %v262, 1
        %v265 = vor.u32 %v260, %v264
        %v267 = vshll.u32 %v257, 16
        %v269 = vrot.slane %v267, 1
        %v270 = vsel %vm258, %v265, %v269
        %v273 = vunpack.c.l.b16 %v241
        %v274 = vpack.c.b16 %v254, %v273
        %vm275 = vcmask 1046528
        %v276 = vrot.slane %v274, 1
        %v277 = vrot.slane %v257, 1
        %v278 = vsel %vm275, %v276, %v277
        %v281 = vunpack.c.l.b16 %v242
        %v282 = vpack.c.b16 %v281, %v281
        %vm283 = vsmask.f32 6400
        %v285 = vshrl.u32 %v274, 16
        %v287 = vrot.slane %v285, 1
        %v288 = vshll.u32 %v274, 16
        %v290 = vrot.slane %v288, 2
        %v291 = vor.u32 %v287, %v290
        %v293 = vshrl.u32 %v282, 16
        %v295 = vrot.slane %v293, 1
        %v296 = vshll.u32 %v282, 16
        %v298 = vrot.slane %v296, 2
        %v299 = vor.u32 %v295, %v298
        %v300 = vsel %vm283, %v291, %v299
        %v303 = vunpack.c.l.b16 %v243
        %v304 = vpack.c.b16 %v254, %v303
        %vm305 = vcmask 1045504
        %v306 = vrot.slane %v304, 2
        %v307 = vrot.slane %v282, 2
        %v308 = vsel %vm305, %v306, %v307
        %v310 = vld [vmem:[#allocation5] sm:$0xf]
        %v311 = vld [vmem:[#allocation5 + $0x4] sm:$0xf]
        %v312 = vld [vmem:[#allocation5 + $0x8] sm:$0xf]
        %v313 = vld [vmem:[#allocation5 + $0xc] sm:$0xf]
        %v314 = vld [vmem:[#allocation5 + $0x10] sm:$0xf]
        %v315 = vld [vmem:[#allocation5 + $0x14] sm:$0xf]
        %v316 = vld [vmem:[#allocation5 + $0x18] sm:$0xf]
        %v317 = vld [vmem:[#allocation5 + $0x1c] sm:$0xf]
        %v318 = vld [vmem:[#allocation5 + $0x20] sm:$0xf]
        %v319 = vld [vmem:[#allocation5 + $0x24] sm:$0xf]
        %v320 = vld [vmem:[#allocation5 + $0x28] sm:$0xf]
        %v321 = vld [vmem:[#allocation5 + $0x2c] sm:$0xf]
        %v322 = vld [vmem:[#allocation5 + $0x30] sm:$0xf]
        %v323 = vld [vmem:[#allocation5 + $0x34] sm:$0xf]
        %v324 = vld [vmem:[#allocation5 + $0x38] sm:$0xf]
        %v325 = vld [vmem:[#allocation5 + $0x3c] sm:$0xf]
        %v326 = vld [vmem:[#allocation5 + $0x40] sm:$0xf]
        %v327 = vld [vmem:[#allocation5 + $0x44] sm:$0xf]
        %v328 = vld [vmem:[#allocation5 + $0x48] sm:$0xf]
        %v329 = vld [vmem:[#allocation5 + $0x4c] sm:$0xf]
        %v330 = vld [vmem:[#allocation5 + $0x50] sm:$0xf]
        %v331 = vld [vmem:[#allocation5 + $0x54] sm:$0xf]
        %v332 = vld [vmem:[#allocation5 + $0x58] sm:$0xf]
        %v333 = vld [vmem:[#allocation5 + $0x5c] sm:$0xf]
        %v334 = vld [vmem:[#allocation5 + $0x60] sm:$0xf]
        %v335 = vld [vmem:[#allocation5 + $0x64] sm:$0xf]
        %v336 = vld [vmem:[#allocation5 + $0x68] sm:$0xf]
        %v337 = vld [vmem:[#allocation5 + $0x6c] sm:$0xf]
        %v338 = vld [vmem:[#allocation5 + $0x70] sm:$0xf]
        %v339 = vld [vmem:[#allocation5 + $0x74] sm:$0xf]
        %v340 = vld [vmem:[#allocation5 + $0x78] sm:$0xf]
        %v341 = vld [vmem:[#allocation5 + $0x7c] sm:$0xf]
        %v342 = vld [vmem:[#allocation5 + $0x80] sm:$0xf]
        %v343 = vld [vmem:[#allocation5 + $0x84] sm:$0xf]
        %v344 = vld [vmem:[#allocation5 + $0x88] sm:$0xf]
        %v345 = vld [vmem:[#allocation5 + $0x8c] sm:$0xf]
        %v346 = vld [vmem:[#allocation5 + $0x90] sm:$0xf]
        %v347 = vld [vmem:[#allocation5 + $0x94] sm:$0xf]
        %v348 = vld [vmem:[#allocation5 + $0x98] sm:$0xf]
        %v349 = vld [vmem:[#allocation5 + $0x9c] sm:$0xf]
        %v350 = vld [vmem:[#allocation5 + $0xa0] sm:$0xf]
        %v351 = vld [vmem:[#allocation5 + $0xa4] sm:$0xf]
        %v352 = vld [vmem:[#allocation5 + $0xa8] sm:$0xf]
        %v353 = vld [vmem:[#allocation5 + $0xac] sm:$0xf]
        %v354 = vld [vmem:[#allocation5 + $0xb0] sm:$0xf]
        %v355 = vld [vmem:[#allocation5 + $0xb4] sm:$0xf]
        %v356 = vld [vmem:[#allocation5 + $0xb8] sm:$0xf]
        %v357 = vld [vmem:[#allocation5 + $0xbc] sm:$0xf]
        %v358 = vld [vmem:[#allocation5 + $0xc0] sm:$0xf]
        %v359 = vld [vmem:[#allocation5 + $0xc4] sm:$0xf]
        %v360 = vld [vmem:[#allocation5 + $0xc8] sm:$0xf]
        %v361 = vld [vmem:[#allocation5 + $0xcc] sm:$0xf]
        %v362 = vld [vmem:[#allocation5 + $0xd0] sm:$0xf]
        %v363 = vld [vmem:[#allocation5 + $0xd4] sm:$0xf]
        %v364 = vld [vmem:[#allocation5 + $0xd8] sm:$0xf]
        %v365 = vld [vmem:[#allocation5 + $0xdc] sm:$0xf]
        %v366 = vld [vmem:[#allocation5 + $0xe0] sm:$0xf]
        %v367 = vld [vmem:[#allocation5 + $0xe4] sm:$0xf]
        %v368 = vld [vmem:[#allocation5 + $0xe8] sm:$0xf]
        %v369 = vld [vmem:[#allocation5 + $0xec] sm:$0xf]
        %v370 = vld [vmem:[#allocation5 + $0xf0] sm:$0xf]
        %v371 = vld [vmem:[#allocation5 + $0xf4] sm:$0xf]
        %v372 = vld [vmem:[#allocation5 + $0xf8] sm:$0xf]
        %v373 = vld [vmem:[#allocation5 + $0xfc] sm:$0xf]
        %v374 = vld [vmem:[#allocation5 + $0x100] sm:$0xf]
        %v375 = vld [vmem:[#allocation5 + $0x104] sm:$0xf]
        %v376 = vld [vmem:[#allocation5 + $0x108] sm:$0xf]
        %v377 = vld [vmem:[#allocation5 + $0x10c] sm:$0xf]
        %v378 = vld [vmem:[#allocation5 + $0x110] sm:$0xf]
        %v379 = vld [vmem:[#allocation5 + $0x114] sm:$0xf]
        %v380 = vld [vmem:[#allocation5 + $0x118] sm:$0xf]
        %v381 = vld [vmem:[#allocation5 + $0x11c] sm:$0xf]
        %v382 = vld [vmem:[#allocation5 + $0x120] sm:$0xf]
        %v383 = vld [vmem:[#allocation5 + $0x124] sm:$0xf]
        %v384 = vld [vmem:[#allocation5 + $0x128] sm:$0xf]
        %v385 = vld [vmem:[#allocation5 + $0x12c] sm:$0xf]
        %v386 = vld [vmem:[#allocation5 + $0x130] sm:$0xf]
        %v387 = vld [vmem:[#allocation5 + $0x134] sm:$0xf]
        %v388 = vld [vmem:[#allocation5 + $0x138] sm:$0xf]
        %v389 = vld [vmem:[#allocation5 + $0x13c] sm:$0xf]
        %v390 = vld [vmem:[#allocation7] sm:$0x1]
        %v392 = vlaneseq
        %v393 = vshrl.u32 %v392, 7
        %v394 = vsub.s32 0, %v393
        %v395 = vrot.slane %v390, %v394
        %v477 = vunpack.c.l.b16 %v310
        %v478 = vunpack.c.l.b16 %v311
        %v479 = vunpack.c.l.b16 %v312
        %v480 = vunpack.c.l.b16 %v313
        %v481 = vunpack.c.l.b16 %v314
        %v482 = vunpack.c.l.b16 %v315
        %v483 = vunpack.c.l.b16 %v316
        %v484 = vunpack.c.l.b16 %v317
        %v485 = vunpack.c.l.b16 %v318
        %v486 = vunpack.c.l.b16 %v319
        %v487 = vunpack.c.l.b16 %v320
        %v488 = vunpack.c.l.b16 %v321
        %v489 = vunpack.c.l.b16 %v322
        %v490 = vunpack.c.l.b16 %v323
        %v491 = vunpack.c.l.b16 %v324
        %v492 = vunpack.c.l.b16 %v325
        %v493 = vunpack.c.l.b16 %v326
        %v494 = vunpack.c.l.b16 %v327
        %v495 = vunpack.c.l.b16 %v328
        %v496 = vunpack.c.l.b16 %v329
        %v497 = vunpack.c.l.b16 %v330
        %v498 = vunpack.c.l.b16 %v331
        %v499 = vunpack.c.l.b16 %v332
        %v500 = vunpack.c.l.b16 %v333
        %v501 = vunpack.c.l.b16 %v334
        %v502 = vunpack.c.l.b16 %v335
        %v503 = vunpack.c.l.b16 %v336
        %v504 = vunpack.c.l.b16 %v337
        %v505 = vunpack.c.l.b16 %v338
        %v506 = vunpack.c.l.b16 %v339
        %v507 = vunpack.c.l.b16 %v340
        %v508 = vunpack.c.l.b16 %v341
        %v509 = vunpack.c.l.b16 %v342
        %v510 = vunpack.c.l.b16 %v343
        %v511 = vunpack.c.l.b16 %v344
        %v512 = vunpack.c.l.b16 %v345
        %v513 = vunpack.c.l.b16 %v346
        %v514 = vunpack.c.l.b16 %v347
        %v515 = vunpack.c.l.b16 %v348
        %v516 = vunpack.c.l.b16 %v349
        %v517 = vunpack.c.l.b16 %v350
        %v518 = vunpack.c.l.b16 %v351
        %v519 = vunpack.c.l.b16 %v352
        %v520 = vunpack.c.l.b16 %v353
        %v521 = vunpack.c.l.b16 %v354
        %v522 = vunpack.c.l.b16 %v355
        %v523 = vunpack.c.l.b16 %v356
        %v524 = vunpack.c.l.b16 %v357
        %v525 = vunpack.c.l.b16 %v358
        %v526 = vunpack.c.l.b16 %v359
        %v527 = vunpack.c.l.b16 %v360
        %v528 = vunpack.c.l.b16 %v361
        %v529 = vunpack.c.l.b16 %v362
        %v530 = vunpack.c.l.b16 %v363
        %v531 = vunpack.c.l.b16 %v364
        %v532 = vunpack.c.l.b16 %v365
        %v533 = vunpack.c.l.b16 %v366
        %v534 = vunpack.c.l.b16 %v367
        %v535 = vunpack.c.l.b16 %v368
        %v536 = vunpack.c.l.b16 %v369
        %v537 = vunpack.c.l.b16 %v370
        %v538 = vunpack.c.l.b16 %v371
        %v539 = vunpack.c.l.b16 %v372
        %v540 = vunpack.c.l.b16 %v373
        %v541 = vunpack.c.l.b16 %v374
        %v542 = vunpack.c.l.b16 %v375
        %v543 = vunpack.c.l.b16 %v376
        %v544 = vunpack.c.l.b16 %v377
        %v545 = vunpack.c.l.b16 %v378
        %v546 = vunpack.c.l.b16 %v379
        %v547 = vunpack.c.l.b16 %v380
        %v548 = vunpack.c.l.b16 %v381
        %v549 = vunpack.c.l.b16 %v382
        %v550 = vunpack.c.l.b16 %v383
        %v551 = vunpack.c.l.b16 %v384
        %v552 = vunpack.c.l.b16 %v385
        %v553 = vunpack.c.l.b16 %v386
        %v554 = vunpack.c.l.b16 %v387
        %v555 = vunpack.c.l.b16 %v388
        %v556 = vunpack.c.l.b16 %v389
        %v557 = vpack.c.b16 %v478, %v477
        %v558 = vpack.c.b16 %v480, %v479
        %v559 = vpack.c.b16 %v482, %v481
        %v560 = vpack.c.b16 %v484, %v483
        %v561 = vpack.c.b16 %v486, %v485
        %v562 = vpack.c.b16 %v488, %v487
        %v563 = vpack.c.b16 %v490, %v489
        %v564 = vpack.c.b16 %v492, %v491
        %v565 = vpack.c.b16 %v494, %v493
        %v566 = vpack.c.b16 %v496, %v495
        %v567 = vpack.c.b16 %v498, %v497
        %v568 = vpack.c.b16 %v500, %v499
        %v569 = vpack.c.b16 %v502, %v501
        %v570 = vpack.c.b16 %v504, %v503
        %v571 = vpack.c.b16 %v506, %v505
        %v572 = vpack.c.b16 %v508, %v507
        %v573 = vpack.c.b16 %v510, %v509
        %v574 = vpack.c.b16 %v512, %v511
        %v575 = vpack.c.b16 %v514, %v513
        %v576 = vpack.c.b16 %v516, %v515
        %v577 = vpack.c.b16 %v518, %v517
        %v578 = vpack.c.b16 %v520, %v519
        %v579 = vpack.c.b16 %v522, %v521
        %v580 = vpack.c.b16 %v524, %v523
        %v581 = vpack.c.b16 %v526, %v525
        %v582 = vpack.c.b16 %v528, %v527
        %v583 = vpack.c.b16 %v530, %v529
        %v584 = vpack.c.b16 %v532, %v531
        %v585 = vpack.c.b16 %v534, %v533
        %v586 = vpack.c.b16 %v536, %v535
        %v587 = vpack.c.b16 %v538, %v537
        %v588 = vpack.c.b16 %v540, %v539
        %v589 = vpack.c.b16 %v542, %v541
        %v590 = vpack.c.b16 %v544, %v543
        %v591 = vpack.c.b16 %v546, %v545
        %v592 = vpack.c.b16 %v548, %v547
        %v593 = vpack.c.b16 %v550, %v549
        %v594 = vpack.c.b16 %v552, %v551
        %v595 = vpack.c.b16 %v554, %v553
        %v596 = vpack.c.b16 %v556, %v555
        %637 = vmatprep.subr.bf16.mxu0 0
        %638 = vmatpush1.bf16.msra.mxu0 %v557
        %639 = vmatprep.subr.bf16.mxu0 0
        %640 = vmatpush1.bf16.msra.mxu0 %v558
        %641 = vmatprep.subr.bf16.mxu0 0
        %642 = vmatpush1.bf16.msra.mxu0 %v559
        %643 = vmatprep.subr.bf16.mxu0 0
        %644 = vmatpush1.bf16.msra.mxu0 %v560
        %645 = vmatprep.subr.bf16.mxu0 0
        %646 = vmatpush1.bf16.msra.mxu0 %v561
        %647 = vmatprep.subr.bf16.mxu0 0
        %648 = vmatpush1.bf16.msra.mxu0 %v562
        %649 = vmatprep.subr.bf16.mxu0 0
        %650 = vmatpush1.bf16.msra.mxu0 %v563
        %651 = vmatprep.subr.bf16.mxu0 0
        %652 = vmatpush1.bf16.msra.mxu0 %v564
        %653 = vmatprep.subr.bf16.mxu0 0
        %654 = vmatpush1.bf16.msra.mxu0 %v565
        %655 = vmatprep.subr.bf16.mxu0 0
        %656 = vmatpush1.bf16.msra.mxu0 %v566
        %657 = vmatprep.subr.bf16.mxu0 0
        %658 = vmatpush1.bf16.msra.mxu0 %v567
        %659 = vmatprep.subr.bf16.mxu0 0
        %660 = vmatpush1.bf16.msra.mxu0 %v568
        %661 = vmatprep.subr.bf16.mxu0 0
        %662 = vmatpush1.bf16.msra.mxu0 %v569
        %663 = vmatprep.subr.bf16.mxu0 0
        %664 = vmatpush1.bf16.msra.mxu0 %v570
        %665 = vmatprep.subr.bf16.mxu0 0
        %666 = vmatpush1.bf16.msra.mxu0 %v571
        %667 = vmatprep.subr.bf16.mxu0 0
        %668 = vmatpush1.bf16.msra.mxu0 %v572
        %669 = vmatprep.mubr.bf16.mxu0 %v270
        %670 = vmatmul.mubr.bf16.gmra.mrb[0].mxu0 %v248
        %v671 = vpop.f32.mrb[0].mxu0
        %v672 = vadd.f32 %v395, %v671
        %v673 = vpop.f32.mrb[0].mxu0
        %v674 = vpop.f32.mrb[0].mxu0
        %v675 = vadd.f32 %v395, %v674
        %v676 = vpop.f32.mrb[0].mxu0
        %677 = vdwg.mxu0
        %678 = vmatprep.subr.bf16.mxu0 0
        %679 = vmatpush1.bf16.msra.mxu0 %v573
        %680 = vmatprep.subr.bf16.mxu0 0
        %681 = vmatpush1.bf16.msra.mxu0 %v574
        %682 = vmatprep.subr.bf16.mxu0 0
        %683 = vmatpush1.bf16.msra.mxu0 %v575
        %684 = vmatprep.subr.bf16.mxu0 0
        %685 = vmatpush1.bf16.msra.mxu0 %v576
        %686 = vmatprep.subr.bf16.mxu0 0
        %687 = vmatpush1.bf16.msra.mxu0 %v577
        %688 = vmatprep.subr.bf16.mxu0 0
        %689 = vmatpush1.bf16.msra.mxu0 %v578
        %690 = vmatprep.subr.bf16.mxu0 0
        %691 = vmatpush1.bf16.msra.mxu0 %v579
        %692 = vmatprep.subr.bf16.mxu0 0
        %693 = vmatpush1.bf16.msra.mxu0 %v580
        %694 = vmatprep.subr.bf16.mxu0 0
        %695 = vmatpush1.bf16.msra.mxu0 %v581
        %696 = vmatprep.subr.bf16.mxu0 0
        %697 = vmatpush1.bf16.msra.mxu0 %v582
        %698 = vmatprep.subr.bf16.mxu0 0
        %699 = vmatpush1.bf16.msra.mxu0 %v583
        %700 = vmatprep.subr.bf16.mxu0 0
        %701 = vmatpush1.bf16.msra.mxu0 %v584
        %702 = vmatprep.subr.bf16.mxu0 0
        %703 = vmatpush1.bf16.msra.mxu0 %v585
        %704 = vmatprep.subr.bf16.mxu0 0
        %705 = vmatpush1.bf16.msra.mxu0 %v586
        %706 = vmatprep.subr.bf16.mxu0 0
        %707 = vmatpush1.bf16.msra.mxu0 %v587
        %708 = vmatprep.subr.bf16.mxu0 0
        %709 = vmatpush1.bf16.msra.mxu0 %v588
        %710 = vmatprep.mubr.bf16.mxu0 %v300
        %711 = vmatmul.mubr.bf16.gmra.mrb[0].mxu0 %v278
        %v712 = vpop.f32.mrb[0].mxu0
        %v713 = vadd.f32 %v672, %v712
        %v714 = vpop.f32.mrb[0].mxu0
        %v715 = vpop.f32.mrb[0].mxu0
        %v716 = vadd.f32 %v675, %v715
        %v717 = vpop.f32.mrb[0].mxu0
        %718 = vdwg.mxu0
        %719 = vmatprep.subr.bf16.mxu0 0
        %720 = vmatpush1.bf16.msra.mxu0 %v589
        %721 = vmatprep.subr.bf16.mxu0 0
        %722 = vmatpush1.bf16.msra.mxu0 %v590
        %723 = vmatprep.subr.bf16.mxu0 0
        %724 = vmatpush1.bf16.msra.mxu0 %v591
        %725 = vmatprep.subr.bf16.mxu0 0
        %726 = vmatpush1.bf16.msra.mxu0 %v592
        %727 = vmatprep.subr.bf16.mxu0 0
        %728 = vmatpush1.bf16.msra.mxu0 %v593
        %729 = vmatprep.subr.bf16.mxu0 0
        %730 = vmatpush1.bf16.msra.mxu0 %v594
        %731 = vmatprep.subr.bf16.mxu0 0
        %732 = vmatpush1.bf16.msra.mxu0 %v595
        %733 = vmatprep.subr.bf16.mxu0 0
        %734 = vmatpush1.bf16.msra.mxu0 %v596
        %735 = vmatprep.subr.bf16.mxu0 0
        %736 = vmatpush1.bf16.msra.mxu0 0
        %737 = vmatprep.subr.bf16.mxu0 0
        %738 = vmatpush1.bf16.msra.mxu0 0
        %739 = vmatprep.subr.bf16.mxu0 0
        %740 = vmatpush1.bf16.msra.mxu0 0
        %741 = vmatprep.subr.bf16.mxu0 0
        %742 = vmatpush1.bf16.msra.mxu0 0
        %743 = vmatprep.subr.bf16.mxu0 0
        %744 = vmatpush1.bf16.msra.mxu0 0
        %745 = vmatprep.subr.bf16.mxu0 0
        %746 = vmatpush1.bf16.msra.mxu0 0
        %747 = vmatprep.subr.bf16.mxu0 0
        %748 = vmatpush1.bf16.msra.mxu0 0
        %749 = vmatprep.subr.bf16.mxu0 0
        %750 = vmatpush1.bf16.msra.mxu0 0
        %751 = vmatprep.mubr.bf16.mxu0 0
        %752 = vmatmul.mubr.bf16.gmra.mrb[0].mxu0 %v308
        %v753 = vpop.f32.mrb[0].mxu0
        %v754 = vadd.f32 %v713, %v753
        %v755 = vpop.f32.mrb[0].mxu0
        %v756 = vpop.f32.mrb[0].mxu0
        %v757 = vadd.f32 %v716, %v756
        %v758 = vpop.f32.mrb[0].mxu0
        %759 = vdwg.mxu0
        %v760 = vmax.f32 %v754, 0.0
        %v761 = vmax.f32 %v757, 0.0
        %762 = vst [vmem:[%s233] sm:$0xff] %v760
        %763 = vst [vmem:[%s233 + $0x8] sm:$0xff] %v761
        %s764 = sand.u32 %s113, 1
        %s765 = scalar_lea.sflag [#allocation4], %s764
        %s766 = sand.u32 %s113, 1
        %s767 = smul.addr %s766, 16
        %s768 = scalar_lea.vmem [#allocation8], %s767
        // Predicated region
        $region45: #{tpu_custom_call.1} parent=31 // pred_check
          %p769 = pneg %p123
        $region46: #{tpu_custom_call.1} parent=31 // pred_check_branch
          %771 = sbr.rel (%p769) target = $region48
        $region47: #{tpu_custom_call.1} parent=31 // pred_region
          %s772 = smul.u32 2, %s26
          %s774 = ssub.s32 256, 256
          %775 = vsyncadd %s765, %s774
          %s776 = smul.addr %s25, 2
          %s777 = sadd.s32 %s772, %s776
          %s778 = smul.addr %s777, 128
          %s779 = scalar_lea.hbm %s3, %s778
          %s780 = sshll.u32 %s768, 4
          %s781 = int_to_ptr.vmem [resolvable:$true] %s780
          %786 = dma.vmem_to_hbm [thread:$0]  %s781, 256, %s779, %s765, 128, 128, 8
        $region48: #{tpu_custom_call.1} parent=31 // pred_fallthru
          _
      $region32: #{tpu_custom_call.1} parent=5 // pred_fallthru
        _
      %p787 = scmp.le.s32.totalorder 2, %s16
      // Predicated region
      $region49: #{tpu_custom_call.1} parent=5 // pred_check
        %p788 = pneg %p787
      $region50: #{tpu_custom_call.1} parent=5 // pred_check_branch
        %790 = sbr.rel (%p788) target = $region52
      $region51: #{tpu_custom_call.1} parent=5 // pred_region
        %s791 = ssub.s32 %s16, 2
        // Predicated region
        $region53: #{tpu_custom_call.1} parent=51 // pred_check
          %p792 = pneg %p129
        $region54: #{tpu_custom_call.1} parent=51 // pred_check_branch
          %794 = sbr.rel (%p792) target = $region56
        $region55: #{tpu_custom_call.1} parent=51 // pred_region
          %s795 = sand.u32 %s114, 1
          %s796 = scalar_lea.sflag [#allocation4], %s795
          %s797 = sand.u32 %s114, 1
          %s798 = smul.addr %s797, 16
          %s799 = scalar_lea.vmem [#allocation8], %s798
          %800 = dma.done %s796, 256
        $region56: #{tpu_custom_call.1} parent=51 // pred_fallthru
          _
      $region52: #{tpu_custom_call.1} parent=5 // pred_fallthru
        _
    $region6: #{tpu_custom_call.1} parent=1 // loop_footer
      %s20 = sadd.s32 1, %s16
    $region7: #{tpu_custom_call.1} parent=1 // loop_footer_branch
      %15 = sbr.rel target = $region3
    $region8: #{tpu_custom_call.1} parent=1 // loop_exit
      _
    %801 = vsyncpa [#allocation3], 1
    %s802 = scalar_lea.sflag [#allocation3], 1
    %803 = vsyncpa %s802, 1
    %804 = vsyncpa [#allocation6], 1
    %805 = vsyncpa [#allocation4], 1
    %s806 = scalar_lea.sflag [#allocation4], 1
    %807 = vsyncpa %s806, 1

</llo_original>
